<compile_context>
chip_gen: v7x
topology: tpu7x:2x2x1
jax: 0.10.0
libtpu: 0.0.40
codegen_flags: <defaults>
</compile_context>

<pallas_src>
import functools

import numpy as np
import jax
import jax.numpy as jnp
from jax import lax
from jax.experimental import pallas as pl
from jax.experimental.pallas import tpu as pltpu


# -----------------------------------------------------------------------------
# Pallas kernel: per-image soft-N-cut numerators / denominators for all classes
# -----------------------------------------------------------------------------
def _ncut_kernel(p4_ref, pf_ref, th_ref, tw_ref, out_ref, prod_ref, *,
                 n_classes, pixel_std):
    # p4_ref : (1, C, H, W) f32   pf_ref: (1, C, H*W) f32 (same bytes, flat view)
    # th_ref : (H, H)  banded Gaussian (rows)   tw_ref: (W, W) (cols)
    # out_ref: (1, K, 128) f32 -- lane 0 = num_k, lane 1 = den_k, row k = class
    # prod_ref: VMEM scratch (K, H, W) f32 holding G_k * wgt_k
    K = n_classes
    _, C, H, W = p4_ref.shape
    inv_hw = 1.0 / float(H * W)
    inv_pix2 = 1.0 / (float(pixel_std) ** 2)

    # ---- class means via one MXU Gram matmul --------------------------------
    Pf = pf_ref[0]                                        # (C, HW)
    PfK = Pf[0:K]                                         # (K, HW)
    s = jnp.sum(PfK, axis=1, keepdims=True)               # (K, 1)  sum(p_k)
    gram = lax.dot_general(                               # (K, C)  sum(p_k*p_c)
        PfK, Pf, (((1,), (1,)), ((), ())),
        preferred_element_type=jnp.float32)
    # M[k, c] = mean(p_c * p_k) / (mean(p_k) + 1e-5)
    M = (gram * inv_hw) / (s * inv_hw + 1e-5)             # (K, C)
    msq = jnp.sum(M * M, axis=1, keepdims=True)           # (K, 1)  sum_c m^2

    # ---- class-independent sum_c p_c^2 (ref-sliced, keeps live set small) ---
    S2 = jnp.zeros((H, W), jnp.float32)
    for c in range(C):
        pc = p4_ref[0, c]
        S2 = S2 + pc * pc

    # ---- separable conv of all class maps; T_W side batched over classes ----
    TW = tw_ref[...]                                      # (W, W)
    TH = th_ref[...]                                      # (H, H)
    A = jnp.dot(p4_ref[0, 0:K].reshape(K * H, W), TW,
                preferred_element_type=jnp.float32)       # (K*H, W)

    for k in range(K):                                    # K is small (static)
        # cross_k(h,w) = sum_c M[k,c] * p_c(h,w)   (VPU plane FMAs)
        cross = jnp.zeros((H, W), jnp.float32)
        for c in range(C):
            cross = cross + M[k:k + 1, c:c + 1] * p4_ref[0, c]
        # diff_k = sum_c (p_c - m_{c,k})^2 = S2 - 2*cross_k + msq_k
        diff = S2 - 2.0 * cross + msq[k:k + 1, 0:1]       # (H, W)
        wgt = jnp.exp(-(diff * diff) * inv_pix2)          # (H, W)

        # G_k = T_H @ p_k @ T_W  ("same" zero-padded conv of p_k)
        gk = jnp.dot(TH, A[k * H:(k + 1) * H, :],
                     preferred_element_type=jnp.float32)  # (H, W)
        prod_ref[k] = gk * wgt                            # stage G_k * wgt_k

    # ---- batched per-class reductions (symmetric-trace weighted sums) -------
    prod = prod_ref[...]                                  # (K, H, W)
    p4k = p4_ref[0, 0:K]                                  # (K, H, W)
    num = jnp.sum(jnp.sum(prod * p4k, axis=2), axis=1, keepdims=True)  # (K, 1)
    den = jnp.sum(jnp.sum(prod, axis=2), axis=1, keepdims=True)        # (K, 1)

    lane = lax.broadcasted_iota(jnp.int32, (K, 128), 1)
    out_ref[0] = (jnp.where(lane == 0, num, 0.0) +
                  jnp.where(lane == 1, den, 0.0))


# -----------------------------------------------------------------------------
# Host-side helpers
# -----------------------------------------------------------------------------
def _band_gauss_matrix(n, radius, shape_std):
    """T[a,b] = exp(-0.5*((a-b)/shape_std)^2) for |a-b| <= radius else 0."""
    idx = np.arange(n, dtype=np.float64)
    d = idx[:, None] - idx[None, :]
    g = np.exp(-0.5 * (d / float(shape_std)) ** 2)
    g = np.where(np.abs(d) <= radius, g, 0.0)
    return g.astype(np.float32)


def ncut_loss_pallas(pred, target, *, radius=5, shape_std=4.0, pixel_std=10.0):
    """pred: (B, C, H, W) probabilities; target: (B, K, H, W) (only K is used)."""
    pred = pred.astype(jnp.float32)
    B, C, H, W = pred.shape
    n_classes = target.shape[1]
    assert n_classes <= C

    t_h = jnp.asarray(_band_gauss_matrix(H, radius, shape_std))
    t_w = jnp.asarray(_band_gauss_matrix(W, radius, shape_std))
    pred_flat = pred.reshape(B, C, H * W)     # free view, used for Gram matmul

    kernel = functools.partial(
        _ncut_kernel, n_classes=n_classes, pixel_std=float(pixel_std))

    # Explicit VMEM budget: double-buffered input blocks + scratch + headroom.
    block_bytes = 2 * (2 * C * H * W * 4) + H * H * 4 + W * W * 4 \
        + n_classes * H * W * 4 + n_classes * 128 * 4
    vmem_limit = int(min(100 * 2**20, max(32 * 2**20, 4 * block_bytes)))

    out = pl.pallas_call(
        kernel,
        out_shape=jax.ShapeDtypeStruct((B, n_classes, 128), jnp.float32),
        grid_spec=pltpu.PrefetchScalarGridSpec(
            num_scalar_prefetch=0,
            grid=(B,),
            in_specs=[
                pl.BlockSpec((1, C, H, W), lambda b: (b, 0, 0, 0)),
                pl.BlockSpec((1, C, H * W), lambda b: (b, 0, 0)),
                pl.BlockSpec((H, H), lambda b: (0, 0)),
                pl.BlockSpec((W, W), lambda b: (0, 0)),
            ],
            out_specs=pl.BlockSpec((1, n_classes, 128), lambda b: (b, 0, 0)),
            scratch_shapes=[pltpu.VMEM((n_classes, H, W), jnp.float32)],
        ),
        compiler_params=pltpu.CompilerParams(
            dimension_semantics=("parallel",),
            vmem_limit_bytes=vmem_limit,
        ),
    )(pred, pred_flat, t_h, t_w)

    # Tiny epilogue: sum partials over batch, then per-class |num/(den+eps)|.
    sums = jnp.sum(out, axis=0)                  # (K, 128)
    num = sums[:, 0]
    den = sums[:, 1]
    loss = jnp.sum(jnp.abs(num / (den + 1e-6)))
    return jnp.float32(n_classes) - loss


# -----------------------------------------------------------------------------
# Pure numpy float64 reference (direct 121-tap padded conv, mirrors PyTorch)
# -----------------------------------------------------------------------------
def _ncut_loss_ref_np(pred, target, radius, shape_std, pixel_std):
    pred = np.asarray(pred, np.float64)
    B, C, H, W = pred.shape
    n_classes = target.shape[1]

    x2 = np.linspace(-radius, radius, 2 * radius + 1) ** 2
    dist = np.sqrt(x2.reshape(-1, 1) + x2.reshape(1, -1)) / shape_std
    kern = np.exp(-0.5 * dist ** 2)              # norm.pdf(dist)/norm.pdf(0)

    def conv2d_same(x):
        r = radius
        xp = np.pad(x, r)
        out = np.zeros_like(x)
        for i in range(2 * r + 1):
            for j in range(2 * r + 1):
                out += kern[i, j] * xp[i:i + x.shape[0], j:j + x.shape[1]]
        return out

    loss = 0.0
    for k in range(n_classes):
        kp = pred[:, k:k + 1]                                            # (B,1,H,W)
        mean = (pred * kp).mean(axis=(2, 3), keepdims=True) / (
            kp.mean(axis=(2, 3), keepdims=True) + 1e-5)
        diff = ((pred - mean) ** 2).sum(axis=1, keepdims=True)           # (B,1,H,W)
        wgt = np.exp(-(diff ** 2) / pixel_std ** 2)
        cn = np.stack([conv2d_same((kp * wgt)[b, 0]) for b in range(B)])
        cd = np.stack([conv2d_same(wgt[b, 0]) for b in range(B)])
        num = np.sum(kp[:, 0] * cn)
        den = np.sum(kp[:, 0] * cd)
        loss += abs(num / (den + 1e-6))
    return n_classes - loss


if __name__ == "__main__":
    B, C, H, W = 2, 4, 16, 16
    radius, shape_std, pixel_std = 5, 4.0, 10.0

    key = jax.random.PRNGKey(0)
    k1, k2 = jax.random.split(key)

    # Soft class probabilities, as produced by the W-Net encoder softmax.
    pred = jax.nn.softmax(jax.random.normal(k1, (B, C, H, W), jnp.float32), axis=1)
    # Target mask (only its channel count is used by NCutLoss.forward).
    target = jax.nn.one_hot(
        jax.random.randint(k2, (B, H, W), 0, C), C
    ).transpose(0, 3, 1, 2).astype(jnp.float32)

    loss = ncut_loss_pallas(pred, target, radius=radius,
                            shape_std=shape_std, pixel_std=pixel_std)
    loss = jax.block_until_ready(loss)

    ref = _ncut_loss_ref_np(np.asarray(pred), np.asarray(target),
                            radius, shape_std, pixel_std)
    # Tolerance accounts for MXU f32 matmul pass precision vs float64 reference.
    np.testing.assert_allclose(float(loss), ref, rtol=2e-2, atol=2e-2)

    print("KERNEL_OK")
</pallas_src>

<mosaic_0001>
module attributes {stable_mosaic.version = 11 : i64} {
  func.func @_ncut_kernel(%arg0: i32, %arg1: memref<1x4x16x16xf32, #tpu.memory_space<vmem>>, %arg2: memref<1x4x256xf32, #tpu.memory_space<vmem>>, %arg3: memref<16x16xf32, #tpu.memory_space<vmem>>, %arg4: memref<16x16xf32, #tpu.memory_space<vmem>>, %arg5: memref<1x4x128xf32, #tpu.memory_space<vmem>>, %arg6: memref<4x16x16xf32, #tpu.memory_space<vmem>>) attributes {dimension_semantics = [#tpu.dimension_semantics<parallel>], iteration_bounds = array<i64: 2>, scalar_prefetch = 0 : i64, scratch_operands = 1 : i64, tpu.core_type = #tpu.core_type<tc>, window_params = [{transform_indices = @transform_0, window_bounds = array<i64: 1, 4, 16, 16>}, {transform_indices = @transform_1, window_bounds = array<i64: 1, 4, 256>}, {pipeline_mode = #tpu.pipeline_mode<synchronous>, transform_indices = @transform_2, window_bounds = array<i64: 16, 16>}, {pipeline_mode = #tpu.pipeline_mode<synchronous>, transform_indices = @transform_3, window_bounds = array<i64: 16, 16>}, {transform_indices = @transform_4, window_bounds = array<i64: 1, 4, 128>}]} {
    %c0 = arith.constant 0 : index
    %c0_0 = arith.constant 0 : index
    %c0_1 = arith.constant 0 : index
    %0 = vector.load %arg2[%c0, %c0_0, %c0_1] : memref<1x4x256xf32, #tpu.memory_space<vmem>>, vector<1x4x256xf32>
    %1 = vector.shape_cast %0 : vector<1x4x256xf32> to vector<4x256xf32>
    %cst = arith.constant dense<0.000000e+00> : vector<4xf32>
    %2 = vector.multi_reduction <add>, %1, %cst [1] : vector<4x256xf32> to vector<4xf32>
    %3 = vector.shape_cast %2 : vector<4xf32> to vector<4x1xf32>
    %cst_2 = arith.constant dense<0.000000e+00> : vector<4x4xf32>
    %4 = tpu.matmul %1, %1, %cst_2 {dimension_numbers = #tpu.dot_dimension_numbers<[1], [1], [0], [0], [0, 0, 1, 0], [], []>} : vector<4x256xf32>, vector<4x256xf32>, vector<4x4xf32> -> vector<4x4xf32>
    %cst_3 = arith.constant 3.906250e-03 : f32
    %5 = vector.broadcast %cst_3 : f32 to vector<4x4xf32>
    %6 = arith.mulf %4, %5 : vector<4x4xf32>
    %cst_4 = arith.constant 3.906250e-03 : f32
    %7 = vector.broadcast %cst_4 : f32 to vector<4x1xf32>
    %8 = arith.mulf %3, %7 : vector<4x1xf32>
    %cst_5 = arith.constant 9.99999974E-6 : f32
    %9 = vector.broadcast %cst_5 : f32 to vector<4x1xf32>
    %10 = arith.addf %8, %9 : vector<4x1xf32>
    %11 = vector.broadcast %10 : vector<4x1xf32> to vector<4x4xf32>
    %12 = arith.divf %6, %11 : vector<4x4xf32>
    %13 = arith.mulf %12, %12 : vector<4x4xf32>
    %cst_6 = arith.constant dense<0.000000e+00> : vector<4xf32>
    %14 = vector.multi_reduction <add>, %13, %cst_6 [1] : vector<4x4xf32> to vector<4xf32>
    %15 = vector.shape_cast %14 : vector<4xf32> to vector<4x1xf32>
    %cst_7 = arith.constant 0.000000e+00 : f32
    %16 = vector.broadcast %cst_7 : f32 to vector<16x16xf32>
    %c0_8 = arith.constant 0 : index
    %c0_9 = arith.constant 0 : index
    %c0_10 = arith.constant 0 : index
    %c0_11 = arith.constant 0 : index
    %17 = vector.load %arg1[%c0_8, %c0_9, %c0_10, %c0_11] : memref<1x4x16x16xf32, #tpu.memory_space<vmem>>, vector<1x1x16x16xf32>
    %18 = vector.shape_cast %17 : vector<1x1x16x16xf32> to vector<16x16xf32>
    %19 = arith.mulf %18, %18 : vector<16x16xf32>
    %20 = arith.addf %16, %19 : vector<16x16xf32>
    %c0_12 = arith.constant 0 : index
    %c1 = arith.constant 1 : index
    %c0_13 = arith.constant 0 : index
    %c0_14 = arith.constant 0 : index
    %21 = vector.load %arg1[%c0_12, %c1, %c0_13, %c0_14] : memref<1x4x16x16xf32, #tpu.memory_space<vmem>>, vector<1x1x16x16xf32>
    %22 = vector.shape_cast %21 : vector<1x1x16x16xf32> to vector<16x16xf32>
    %23 = arith.mulf %22, %22 : vector<16x16xf32>
    %24 = arith.addf %20, %23 : vector<16x16xf32>
    %c0_15 = arith.constant 0 : index
    %c2 = arith.constant 2 : index
    %c0_16 = arith.constant 0 : index
    %c0_17 = arith.constant 0 : index
    %25 = vector.load %arg1[%c0_15, %c2, %c0_16, %c0_17] : memref<1x4x16x16xf32, #tpu.memory_space<vmem>>, vector<1x1x16x16xf32>
    %26 = vector.shape_cast %25 : vector<1x1x16x16xf32> to vector<16x16xf32>
    %27 = arith.mulf %26, %26 : vector<16x16xf32>
    %28 = arith.addf %24, %27 : vector<16x16xf32>
    %c0_18 = arith.constant 0 : index
    %c3 = arith.constant 3 : index
    %c0_19 = arith.constant 0 : index
    %c0_20 = arith.constant 0 : index
    %29 = vector.load %arg1[%c0_18, %c3, %c0_19, %c0_20] : memref<1x4x16x16xf32, #tpu.memory_space<vmem>>, vector<1x1x16x16xf32>
    %30 = vector.shape_cast %29 : vector<1x1x16x16xf32> to vector<16x16xf32>
    %31 = arith.mulf %30, %30 : vector<16x16xf32>
    %32 = arith.addf %28, %31 : vector<16x16xf32>
    %c0_21 = arith.constant 0 : index
    %c0_22 = arith.constant 0 : index
    %33 = vector.load %arg4[%c0_21, %c0_22] : memref<16x16xf32, #tpu.memory_space<vmem>>, vector<16x16xf32>
    %c0_23 = arith.constant 0 : index
    %c0_24 = arith.constant 0 : index
    %34 = vector.load %arg3[%c0_23, %c0_24] : memref<16x16xf32, #tpu.memory_space<vmem>>, vector<16x16xf32>
    %c0_25 = arith.constant 0 : index
    %c0_26 = arith.constant 0 : index
    %c0_27 = arith.constant 0 : index
    %c0_28 = arith.constant 0 : index
    %35 = vector.load %arg1[%c0_25, %c0_26, %c0_27, %c0_28] : memref<1x4x16x16xf32, #tpu.memory_space<vmem>>, vector<1x4x16x16xf32>
    %36 = vector.shape_cast %35 : vector<1x4x16x16xf32> to vector<4x16x16xf32>
    %37 = vector.shape_cast %36 : vector<4x16x16xf32> to vector<64x16xf32>
    %cst_29 = arith.constant dense<0.000000e+00> : vector<64x16xf32>
    %38 = tpu.matmul %37, %33, %cst_29 {dimension_numbers = #tpu.dot_dimension_numbers<[1], [0], [0], [1], [0, 0, 1, 1], [], []>} : vector<64x16xf32>, vector<16x16xf32>, vector<64x16xf32> -> vector<64x16xf32>
    %cst_30 = arith.constant 0.000000e+00 : f32
    %39 = vector.broadcast %cst_30 : f32 to vector<16x16xf32>
    %40 = vector.extract_strided_slice %12 {offsets = [0, 0], sizes = [1, 1], strides = [1, 1]} : vector<4x4xf32> to vector<1x1xf32>
    %c0_31 = arith.constant 0 : index
    %c0_32 = arith.constant 0 : index
    %c0_33 = arith.constant 0 : index
    %c0_34 = arith.constant 0 : index
    %41 = vector.load %arg1[%c0_31, %c0_32, %c0_33, %c0_34] : memref<1x4x16x16xf32, #tpu.memory_space<vmem>>, vector<1x1x16x16xf32>
    %42 = vector.shape_cast %41 : vector<1x1x16x16xf32> to vector<16x16xf32>
    %43 = vector.broadcast %40 : vector<1x1xf32> to vector<16x16xf32>
    %44 = arith.mulf %43, %42 : vector<16x16xf32>
    %45 = arith.addf %39, %44 : vector<16x16xf32>
    %46 = vector.extract_strided_slice %12 {offsets = [0, 1], sizes = [1, 1], strides = [1, 1]} : vector<4x4xf32> to vector<1x1xf32>
    %c0_35 = arith.constant 0 : index
    %c1_36 = arith.constant 1 : index
    %c0_37 = arith.constant 0 : index
    %c0_38 = arith.constant 0 : index
    %47 = vector.load %arg1[%c0_35, %c1_36, %c0_37, %c0_38] : memref<1x4x16x16xf32, #tpu.memory_space<vmem>>, vector<1x1x16x16xf32>
    %48 = vector.shape_cast %47 : vector<1x1x16x16xf32> to vector<16x16xf32>
    %49 = vector.broadcast %46 : vector<1x1xf32> to vector<16x16xf32>
    %50 = arith.mulf %49, %48 : vector<16x16xf32>
    %51 = arith.addf %45, %50 : vector<16x16xf32>
    %52 = vector.extract_strided_slice %12 {offsets = [0, 2], sizes = [1, 1], strides = [1, 1]} : vector<4x4xf32> to vector<1x1xf32>
    %c0_39 = arith.constant 0 : index
    %c2_40 = arith.constant 2 : index
    %c0_41 = arith.constant 0 : index
    %c0_42 = arith.constant 0 : index
    %53 = vector.load %arg1[%c0_39, %c2_40, %c0_41, %c0_42] : memref<1x4x16x16xf32, #tpu.memory_space<vmem>>, vector<1x1x16x16xf32>
    %54 = vector.shape_cast %53 : vector<1x1x16x16xf32> to vector<16x16xf32>
    %55 = vector.broadcast %52 : vector<1x1xf32> to vector<16x16xf32>
    %56 = arith.mulf %55, %54 : vector<16x16xf32>
    %57 = arith.addf %51, %56 : vector<16x16xf32>
    %58 = vector.extract_strided_slice %12 {offsets = [0, 3], sizes = [1, 1], strides = [1, 1]} : vector<4x4xf32> to vector<1x1xf32>
    %c0_43 = arith.constant 0 : index
    %c3_44 = arith.constant 3 : index
    %c0_45 = arith.constant 0 : index
    %c0_46 = arith.constant 0 : index
    %59 = vector.load %arg1[%c0_43, %c3_44, %c0_45, %c0_46] : memref<1x4x16x16xf32, #tpu.memory_space<vmem>>, vector<1x1x16x16xf32>
    %60 = vector.shape_cast %59 : vector<1x1x16x16xf32> to vector<16x16xf32>
    %61 = vector.broadcast %58 : vector<1x1xf32> to vector<16x16xf32>
    %62 = arith.mulf %61, %60 : vector<16x16xf32>
    %63 = arith.addf %57, %62 : vector<16x16xf32>
    %cst_47 = arith.constant 2.000000e+00 : f32
    %64 = vector.broadcast %cst_47 : f32 to vector<16x16xf32>
    %65 = arith.mulf %64, %63 : vector<16x16xf32>
    %66 = arith.subf %32, %65 : vector<16x16xf32>
    %67 = vector.extract_strided_slice %15 {offsets = [0, 0], sizes = [1, 1], strides = [1, 1]} : vector<4x1xf32> to vector<1x1xf32>
    %68 = vector.broadcast %67 : vector<1x1xf32> to vector<16x16xf32>
    %69 = arith.addf %66, %68 : vector<16x16xf32>
    %70 = arith.mulf %69, %69 : vector<16x16xf32>
    %cst_48 = arith.constant 0.000000e+00 : f32
    %71 = vector.broadcast %cst_48 : f32 to vector<16x16xf32>
    %72 = arith.subf %71, %70 : vector<16x16xf32>
    %cst_49 = arith.constant 0.00999999977 : f32
    %73 = vector.broadcast %cst_49 : f32 to vector<16x16xf32>
    %74 = arith.mulf %72, %73 : vector<16x16xf32>
    %75 = math.exp %74 : vector<16x16xf32>
    %76 = vector.extract_strided_slice %38 {offsets = [0, 0], sizes = [16, 16], strides = [1, 1]} : vector<64x16xf32> to vector<16x16xf32>
    %cst_50 = arith.constant dense<0.000000e+00> : vector<16x16xf32>
    %77 = tpu.matmul %34, %76, %cst_50 {dimension_numbers = #tpu.dot_dimension_numbers<[1], [0], [0], [1], [0, 0, 1, 1], [], []>} : vector<16x16xf32>, vector<16x16xf32>, vector<16x16xf32> -> vector<16x16xf32>
    %78 = arith.mulf %77, %75 : vector<16x16xf32>
    %c0_51 = arith.constant 0 : index
    %c0_52 = arith.constant 0 : index
    %c0_53 = arith.constant 0 : index
    %79 = vector.load %arg6[%c0_51, %c0_52, %c0_53] : memref<4x16x16xf32, #tpu.memory_space<vmem>>, vector<1x16x16xf32>
    %80 = vector.shape_cast %79 : vector<1x16x16xf32> to vector<16x16xf32>
    %81 = vector.shape_cast %78 : vector<16x16xf32> to vector<1x16x16xf32>
    tpu.vector_store %arg6[%c0_51, %c0_52, %c0_53], %81 {strides = array<i32>} : memref<4x16x16xf32, #tpu.memory_space<vmem>>, vector<1x16x16xf32>,
    %cst_54 = arith.constant 0.000000e+00 : f32
    %82 = vector.broadcast %cst_54 : f32 to vector<16x16xf32>
    %83 = vector.extract_strided_slice %12 {offsets = [1, 0], sizes = [1, 1], strides = [1, 1]} : vector<4x4xf32> to vector<1x1xf32>
    %c0_55 = arith.constant 0 : index
    %c0_56 = arith.constant 0 : index
    %c0_57 = arith.constant 0 : index
    %c0_58 = arith.constant 0 : index
    %84 = vector.load %arg1[%c0_55, %c0_56, %c0_57, %c0_58] : memref<1x4x16x16xf32, #tpu.memory_space<vmem>>, vector<1x1x16x16xf32>
    %85 = vector.shape_cast %84 : vector<1x1x16x16xf32> to vector<16x16xf32>
    %86 = vector.broadcast %83 : vector<1x1xf32> to vector<16x16xf32>
    %87 = arith.mulf %86, %85 : vector<16x16xf32>
    %88 = arith.addf %82, %87 : vector<16x16xf32>
    %89 = vector.extract_strided_slice %12 {offsets = [1, 1], sizes = [1, 1], strides = [1, 1]} : vector<4x4xf32> to vector<1x1xf32>
    %c0_59 = arith.constant 0 : index
    %c1_60 = arith.constant 1 : index
    %c0_61 = arith.constant 0 : index
    %c0_62 = arith.constant 0 : index
    %90 = vector.load %arg1[%c0_59, %c1_60, %c0_61, %c0_62] : memref<1x4x16x16xf32, #tpu.memory_space<vmem>>, vector<1x1x16x16xf32>
    %91 = vector.shape_cast %90 : vector<1x1x16x16xf32> to vector<16x16xf32>
    %92 = vector.broadcast %89 : vector<1x1xf32> to vector<16x16xf32>
    %93 = arith.mulf %92, %91 : vector<16x16xf32>
    %94 = arith.addf %88, %93 : vector<16x16xf32>
    %95 = vector.extract_strided_slice %12 {offsets = [1, 2], sizes = [1, 1], strides = [1, 1]} : vector<4x4xf32> to vector<1x1xf32>
    %c0_63 = arith.constant 0 : index
    %c2_64 = arith.constant 2 : index
    %c0_65 = arith.constant 0 : index
    %c0_66 = arith.constant 0 : index
    %96 = vector.load %arg1[%c0_63, %c2_64, %c0_65, %c0_66] : memref<1x4x16x16xf32, #tpu.memory_space<vmem>>, vector<1x1x16x16xf32>
    %97 = vector.shape_cast %96 : vector<1x1x16x16xf32> to vector<16x16xf32>
    %98 = vector.broadcast %95 : vector<1x1xf32> to vector<16x16xf32>
    %99 = arith.mulf %98, %97 : vector<16x16xf32>
    %100 = arith.addf %94, %99 : vector<16x16xf32>
    %101 = vector.extract_strided_slice %12 {offsets = [1, 3], sizes = [1, 1], strides = [1, 1]} : vector<4x4xf32> to vector<1x1xf32>
    %c0_67 = arith.constant 0 : index
    %c3_68 = arith.constant 3 : index
    %c0_69 = arith.constant 0 : index
    %c0_70 = arith.constant 0 : index
    %102 = vector.load %arg1[%c0_67, %c3_68, %c0_69, %c0_70] : memref<1x4x16x16xf32, #tpu.memory_space<vmem>>, vector<1x1x16x16xf32>
    %103 = vector.shape_cast %102 : vector<1x1x16x16xf32> to vector<16x16xf32>
    %104 = vector.broadcast %101 : vector<1x1xf32> to vector<16x16xf32>
    %105 = arith.mulf %104, %103 : vector<16x16xf32>
    %106 = arith.addf %100, %105 : vector<16x16xf32>
    %cst_71 = arith.constant 2.000000e+00 : f32
    %107 = vector.broadcast %cst_71 : f32 to vector<16x16xf32>
    %108 = arith.mulf %107, %106 : vector<16x16xf32>
    %109 = arith.subf %32, %108 : vector<16x16xf32>
    %110 = vector.extract_strided_slice %15 {offsets = [1, 0], sizes = [1, 1], strides = [1, 1]} : vector<4x1xf32> to vector<1x1xf32>
    %111 = vector.broadcast %110 : vector<1x1xf32> to vector<16x16xf32>
    %112 = arith.addf %109, %111 : vector<16x16xf32>
    %113 = arith.mulf %112, %112 : vector<16x16xf32>
    %cst_72 = arith.constant 0.000000e+00 : f32
    %114 = vector.broadcast %cst_72 : f32 to vector<16x16xf32>
    %115 = arith.subf %114, %113 : vector<16x16xf32>
    %cst_73 = arith.constant 0.00999999977 : f32
    %116 = vector.broadcast %cst_73 : f32 to vector<16x16xf32>
    %117 = arith.mulf %115, %116 : vector<16x16xf32>
    %118 = math.exp %117 : vector<16x16xf32>
    %119 = vector.extract_strided_slice %38 {offsets = [16, 0], sizes = [16, 16], strides = [1, 1]} : vector<64x16xf32> to vector<16x16xf32>
    %cst_74 = arith.constant dense<0.000000e+00> : vector<16x16xf32>
    %120 = tpu.matmul %34, %119, %cst_74 {dimension_numbers = #tpu.dot_dimension_numbers<[1], [0], [0], [1], [0, 0, 1, 1], [], []>} : vector<16x16xf32>, vector<16x16xf32>, vector<16x16xf32> -> vector<16x16xf32>
    %121 = arith.mulf %120, %118 : vector<16x16xf32>
    %c1_75 = arith.constant 1 : index
    %c0_76 = arith.constant 0 : index
    %c0_77 = arith.constant 0 : index
    %122 = vector.load %arg6[%c1_75, %c0_76, %c0_77] : memref<4x16x16xf32, #tpu.memory_space<vmem>>, vector<1x16x16xf32>
    %123 = vector.shape_cast %122 : vector<1x16x16xf32> to vector<16x16xf32>
    %124 = vector.shape_cast %121 : vector<16x16xf32> to vector<1x16x16xf32>
    tpu.vector_store %arg6[%c1_75, %c0_76, %c0_77], %124 {strides = array<i32>} : memref<4x16x16xf32, #tpu.memory_space<vmem>>, vector<1x16x16xf32>,
    %cst_78 = arith.constant 0.000000e+00 : f32
    %125 = vector.broadcast %cst_78 : f32 to vector<16x16xf32>
    %126 = vector.extract_strided_slice %12 {offsets = [2, 0], sizes = [1, 1], strides = [1, 1]} : vector<4x4xf32> to vector<1x1xf32>
    %c0_79 = arith.constant 0 : index
    %c0_80 = arith.constant 0 : index
    %c0_81 = arith.constant 0 : index
    %c0_82 = arith.constant 0 : index
    %127 = vector.load %arg1[%c0_79, %c0_80, %c0_81, %c0_82] : memref<1x4x16x16xf32, #tpu.memory_space<vmem>>, vector<1x1x16x16xf32>
    %128 = vector.shape_cast %127 : vector<1x1x16x16xf32> to vector<16x16xf32>
    %129 = vector.broadcast %126 : vector<1x1xf32> to vector<16x16xf32>
    %130 = arith.mulf %129, %128 : vector<16x16xf32>
    %131 = arith.addf %125, %130 : vector<16x16xf32>
    %132 = vector.extract_strided_slice %12 {offsets = [2, 1], sizes = [1, 1], strides = [1, 1]} : vector<4x4xf32> to vector<1x1xf32>
    %c0_83 = arith.constant 0 : index
    %c1_84 = arith.constant 1 : index
    %c0_85 = arith.constant 0 : index
    %c0_86 = arith.constant 0 : index
    %133 = vector.load %arg1[%c0_83, %c1_84, %c0_85, %c0_86] : memref<1x4x16x16xf32, #tpu.memory_space<vmem>>, vector<1x1x16x16xf32>
    %134 = vector.shape_cast %133 : vector<1x1x16x16xf32> to vector<16x16xf32>
    %135 = vector.broadcast %132 : vector<1x1xf32> to vector<16x16xf32>
    %136 = arith.mulf %135, %134 : vector<16x16xf32>
    %137 = arith.addf %131, %136 : vector<16x16xf32>
    %138 = vector.extract_strided_slice %12 {offsets = [2, 2], sizes = [1, 1], strides = [1, 1]} : vector<4x4xf32> to vector<1x1xf32>
    %c0_87 = arith.constant 0 : index
    %c2_88 = arith.constant 2 : index
    %c0_89 = arith.constant 0 : index
    %c0_90 = arith.constant 0 : index
    %139 = vector.load %arg1[%c0_87, %c2_88, %c0_89, %c0_90] : memref<1x4x16x16xf32, #tpu.memory_space<vmem>>, vector<1x1x16x16xf32>
    %140 = vector.shape_cast %139 : vector<1x1x16x16xf32> to vector<16x16xf32>
    %141 = vector.broadcast %138 : vector<1x1xf32> to vector<16x16xf32>
    %142 = arith.mulf %141, %140 : vector<16x16xf32>
    %143 = arith.addf %137, %142 : vector<16x16xf32>
    %144 = vector.extract_strided_slice %12 {offsets = [2, 3], sizes = [1, 1], strides = [1, 1]} : vector<4x4xf32> to vector<1x1xf32>
    %c0_91 = arith.constant 0 : index
    %c3_92 = arith.constant 3 : index
    %c0_93 = arith.constant 0 : index
    %c0_94 = arith.constant 0 : index
    %145 = vector.load %arg1[%c0_91, %c3_92, %c0_93, %c0_94] : memref<1x4x16x16xf32, #tpu.memory_space<vmem>>, vector<1x1x16x16xf32>
    %146 = vector.shape_cast %145 : vector<1x1x16x16xf32> to vector<16x16xf32>
    %147 = vector.broadcast %144 : vector<1x1xf32> to vector<16x16xf32>
    %148 = arith.mulf %147, %146 : vector<16x16xf32>
    %149 = arith.addf %143, %148 : vector<16x16xf32>
    %cst_95 = arith.constant 2.000000e+00 : f32
    %150 = vector.broadcast %cst_95 : f32 to vector<16x16xf32>
    %151 = arith.mulf %150, %149 : vector<16x16xf32>
    %152 = arith.subf %32, %151 : vector<16x16xf32>
    %153 = vector.extract_strided_slice %15 {offsets = [2, 0], sizes = [1, 1], strides = [1, 1]} : vector<4x1xf32> to vector<1x1xf32>
    %154 = vector.broadcast %153 : vector<1x1xf32> to vector<16x16xf32>
    %155 = arith.addf %152, %154 : vector<16x16xf32>
    %156 = arith.mulf %155, %155 : vector<16x16xf32>
    %cst_96 = arith.constant 0.000000e+00 : f32
    %157 = vector.broadcast %cst_96 : f32 to vector<16x16xf32>
    %158 = arith.subf %157, %156 : vector<16x16xf32>
    %cst_97 = arith.constant 0.00999999977 : f32
    %159 = vector.broadcast %cst_97 : f32 to vector<16x16xf32>
    %160 = arith.mulf %158, %159 : vector<16x16xf32>
    %161 = math.exp %160 : vector<16x16xf32>
    %162 = vector.extract_strided_slice %38 {offsets = [32, 0], sizes = [16, 16], strides = [1, 1]} : vector<64x16xf32> to vector<16x16xf32>
    %cst_98 = arith.constant dense<0.000000e+00> : vector<16x16xf32>
    %163 = tpu.matmul %34, %162, %cst_98 {dimension_numbers = #tpu.dot_dimension_numbers<[1], [0], [0], [1], [0, 0, 1, 1], [], []>} : vector<16x16xf32>, vector<16x16xf32>, vector<16x16xf32> -> vector<16x16xf32>
    %164 = arith.mulf %163, %161 : vector<16x16xf32>
    %c2_99 = arith.constant 2 : index
    %c0_100 = arith.constant 0 : index
    %c0_101 = arith.constant 0 : index
    %165 = vector.load %arg6[%c2_99, %c0_100, %c0_101] : memref<4x16x16xf32, #tpu.memory_space<vmem>>, vector<1x16x16xf32>
    %166 = vector.shape_cast %165 : vector<1x16x16xf32> to vector<16x16xf32>
    %167 = vector.shape_cast %164 : vector<16x16xf32> to vector<1x16x16xf32>
    tpu.vector_store %arg6[%c2_99, %c0_100, %c0_101], %167 {strides = array<i32>} : memref<4x16x16xf32, #tpu.memory_space<vmem>>, vector<1x16x16xf32>,
    %cst_102 = arith.constant 0.000000e+00 : f32
    %168 = vector.broadcast %cst_102 : f32 to vector<16x16xf32>
    %169 = vector.extract_strided_slice %12 {offsets = [3, 0], sizes = [1, 1], strides = [1, 1]} : vector<4x4xf32> to vector<1x1xf32>
    %c0_103 = arith.constant 0 : index
    %c0_104 = arith.constant 0 : index
    %c0_105 = arith.constant 0 : index
    %c0_106 = arith.constant 0 : index
    %170 = vector.load %arg1[%c0_103, %c0_104, %c0_105, %c0_106] : memref<1x4x16x16xf32, #tpu.memory_space<vmem>>, vector<1x1x16x16xf32>
    %171 = vector.shape_cast %170 : vector<1x1x16x16xf32> to vector<16x16xf32>
    %172 = vector.broadcast %169 : vector<1x1xf32> to vector<16x16xf32>
    %173 = arith.mulf %172, %171 : vector<16x16xf32>
    %174 = arith.addf %168, %173 : vector<16x16xf32>
    %175 = vector.extract_strided_slice %12 {offsets = [3, 1], sizes = [1, 1], strides = [1, 1]} : vector<4x4xf32> to vector<1x1xf32>
    %c0_107 = arith.constant 0 : index
    %c1_108 = arith.constant 1 : index
    %c0_109 = arith.constant 0 : index
    %c0_110 = arith.constant 0 : index
    %176 = vector.load %arg1[%c0_107, %c1_108, %c0_109, %c0_110] : memref<1x4x16x16xf32, #tpu.memory_space<vmem>>, vector<1x1x16x16xf32>
    %177 = vector.shape_cast %176 : vector<1x1x16x16xf32> to vector<16x16xf32>
    %178 = vector.broadcast %175 : vector<1x1xf32> to vector<16x16xf32>
    %179 = arith.mulf %178, %177 : vector<16x16xf32>
    %180 = arith.addf %174, %179 : vector<16x16xf32>
    %181 = vector.extract_strided_slice %12 {offsets = [3, 2], sizes = [1, 1], strides = [1, 1]} : vector<4x4xf32> to vector<1x1xf32>
    %c0_111 = arith.constant 0 : index
    %c2_112 = arith.constant 2 : index
    %c0_113 = arith.constant 0 : index
    %c0_114 = arith.constant 0 : index
    %182 = vector.load %arg1[%c0_111, %c2_112, %c0_113, %c0_114] : memref<1x4x16x16xf32, #tpu.memory_space<vmem>>, vector<1x1x16x16xf32>
    %183 = vector.shape_cast %182 : vector<1x1x16x16xf32> to vector<16x16xf32>
    %184 = vector.broadcast %181 : vector<1x1xf32> to vector<16x16xf32>
    %185 = arith.mulf %184, %183 : vector<16x16xf32>
    %186 = arith.addf %180, %185 : vector<16x16xf32>
    %187 = vector.extract_strided_slice %12 {offsets = [3, 3], sizes = [1, 1], strides = [1, 1]} : vector<4x4xf32> to vector<1x1xf32>
    %c0_115 = arith.constant 0 : index
    %c3_116 = arith.constant 3 : index
    %c0_117 = arith.constant 0 : index
    %c0_118 = arith.constant 0 : index
    %188 = vector.load %arg1[%c0_115, %c3_116, %c0_117, %c0_118] : memref<1x4x16x16xf32, #tpu.memory_space<vmem>>, vector<1x1x16x16xf32>
    %189 = vector.shape_cast %188 : vector<1x1x16x16xf32> to vector<16x16xf32>
    %190 = vector.broadcast %187 : vector<1x1xf32> to vector<16x16xf32>
    %191 = arith.mulf %190, %189 : vector<16x16xf32>
    %192 = arith.addf %186, %191 : vector<16x16xf32>
    %cst_119 = arith.constant 2.000000e+00 : f32
    %193 = vector.broadcast %cst_119 : f32 to vector<16x16xf32>
    %194 = arith.mulf %193, %192 : vector<16x16xf32>
    %195 = arith.subf %32, %194 : vector<16x16xf32>
    %196 = vector.extract_strided_slice %15 {offsets = [3, 0], sizes = [1, 1], strides = [1, 1]} : vector<4x1xf32> to vector<1x1xf32>
    %197 = vector.broadcast %196 : vector<1x1xf32> to vector<16x16xf32>
    %198 = arith.addf %195, %197 : vector<16x16xf32>
    %199 = arith.mulf %198, %198 : vector<16x16xf32>
    %cst_120 = arith.constant 0.000000e+00 : f32
    %200 = vector.broadcast %cst_120 : f32 to vector<16x16xf32>
    %201 = arith.subf %200, %199 : vector<16x16xf32>
    %cst_121 = arith.constant 0.00999999977 : f32
    %202 = vector.broadcast %cst_121 : f32 to vector<16x16xf32>
    %203 = arith.mulf %201, %202 : vector<16x16xf32>
    %204 = math.exp %203 : vector<16x16xf32>
    %205 = vector.extract_strided_slice %38 {offsets = [48, 0], sizes = [16, 16], strides = [1, 1]} : vector<64x16xf32> to vector<16x16xf32>
    %cst_122 = arith.constant dense<0.000000e+00> : vector<16x16xf32>
    %206 = tpu.matmul %34, %205, %cst_122 {dimension_numbers = #tpu.dot_dimension_numbers<[1], [0], [0], [1], [0, 0, 1, 1], [], []>} : vector<16x16xf32>, vector<16x16xf32>, vector<16x16xf32> -> vector<16x16xf32>
    %207 = arith.mulf %206, %204 : vector<16x16xf32>
    %c3_123 = arith.constant 3 : index
    %c0_124 = arith.constant 0 : index
    %c0_125 = arith.constant 0 : index
    %208 = vector.load %arg6[%c3_123, %c0_124, %c0_125] : memref<4x16x16xf32, #tpu.memory_space<vmem>>, vector<1x16x16xf32>
    %209 = vector.shape_cast %208 : vector<1x16x16xf32> to vector<16x16xf32>
    %210 = vector.shape_cast %207 : vector<16x16xf32> to vector<1x16x16xf32>
    tpu.vector_store %arg6[%c3_123, %c0_124, %c0_125], %210 {strides = array<i32>} : memref<4x16x16xf32, #tpu.memory_space<vmem>>, vector<1x16x16xf32>,
    %c0_126 = arith.constant 0 : index
    %c0_127 = arith.constant 0 : index
    %c0_128 = arith.constant 0 : index
    %211 = vector.load %arg6[%c0_126, %c0_127, %c0_128] : memref<4x16x16xf32, #tpu.memory_space<vmem>>, vector<4x16x16xf32>
    %c0_129 = arith.constant 0 : index
    %c0_130 = arith.constant 0 : index
    %c0_131 = arith.constant 0 : index
    %c0_132 = arith.constant 0 : index
    %212 = vector.load %arg1[%c0_129, %c0_130, %c0_131, %c0_132] : memref<1x4x16x16xf32, #tpu.memory_space<vmem>>, vector<1x4x16x16xf32>
    %213 = vector.shape_cast %212 : vector<1x4x16x16xf32> to vector<4x16x16xf32>
    %214 = arith.mulf %211, %213 : vector<4x16x16xf32>
    %cst_133 = arith.constant dense<0.000000e+00> : vector<4x16xf32>
    %215 = vector.multi_reduction <add>, %214, %cst_133 [2] : vector<4x16x16xf32> to vector<4x16xf32>
    %cst_134 = arith.constant dense<0.000000e+00> : vector<4xf32>
    %216 = vector.multi_reduction <add>, %215, %cst_134 [1] : vector<4x16xf32> to vector<4xf32>
    %217 = vector.shape_cast %216 : vector<4xf32> to vector<4x1xf32>
    %cst_135 = arith.constant dense<0.000000e+00> : vector<4x16xf32>
    %218 = vector.multi_reduction <add>, %211, %cst_135 [2] : vector<4x16x16xf32> to vector<4x16xf32>
    %cst_136 = arith.constant dense<0.000000e+00> : vector<4xf32>
    %219 = vector.multi_reduction <add>, %218, %cst_136 [1] : vector<4x16xf32> to vector<4xf32>
    %220 = vector.shape_cast %219 : vector<4xf32> to vector<4x1xf32>
    %221 = tpu.iota {dimensions = array<i32: 1>} : vector<4x128xi32>
    %c0_i32 = arith.constant 0 : i32
    %222 = vector.broadcast %c0_i32 : i32 to vector<4x128xi32>
    %223 = arith.cmpi eq, %221, %222 : vector<4x128xi32>
    %cst_137 = arith.constant 0.000000e+00 : f32
    %224 = vector.shape_cast %217 : vector<4x1xf32> to vector<4x1xf32>
    %225 = vector.broadcast %224 : vector<4x1xf32> to vector<4x128xf32>
    %226 = vector.broadcast %cst_137 : f32 to vector<4x128xf32>
    %227 = arith.select %223, %225, %226 : vector<4x128xi1>, vector<4x128xf32>
    %c1_i32 = arith.constant 1 : i32
    %228 = vector.broadcast %c1_i32 : i32 to vector<4x128xi32>
    %229 = arith.cmpi eq, %221, %228 : vector<4x128xi32>
    %cst_138 = arith.constant 0.000000e+00 : f32
    %230 = vector.shape_cast %220 : vector<4x1xf32> to vector<4x1xf32>
    %231 = vector.broadcast %230 : vector<4x1xf32> to vector<4x128xf32>
    %232 = vector.broadcast %cst_138 : f32 to vector<4x128xf32>
    %233 = arith.select %229, %231, %232 : vector<4x128xi1>, vector<4x128xf32>
    %234 = arith.addf %227, %233 : vector<4x128xf32>
    %c0_139 = arith.constant 0 : index
    %c0_140 = arith.constant 0 : index
    %c0_141 = arith.constant 0 : index
    %235 = vector.load %arg5[%c0_139, %c0_140, %c0_141] : memref<1x4x128xf32, #tpu.memory_space<vmem>>, vector<1x4x128xf32>
    %236 = vector.shape_cast %235 : vector<1x4x128xf32> to vector<4x128xf32>
    %237 = vector.shape_cast %234 : vector<4x128xf32> to vector<1x4x128xf32>
    tpu.vector_store %arg5[%c0_139, %c0_140, %c0_141], %237 {strides = array<i32>} : memref<1x4x128xf32, #tpu.memory_space<vmem>>, vector<1x4x128xf32>,
    return
  }
  func.func @transform_0(%arg0: i32) -> (i32, i32, i32, i32) {
    %c0_i32 = arith.constant 0 : i32
    %c0_i32_0 = arith.constant 0 : i32
    %c0_i32_1 = arith.constant 0 : i32
    %c0_i32_2 = arith.constant 0 : i32
    return %arg0, %c0_i32, %c0_i32_0, %c0_i32_1 : i32, i32, i32, i32
  }
  func.func @transform_1(%arg0: i32) -> (i32, i32, i32) {
    %c0_i32 = arith.constant 0 : i32
    %c0_i32_0 = arith.constant 0 : i32
    %c0_i32_1 = arith.constant 0 : i32
    return %arg0, %c0_i32, %c0_i32_0 : i32, i32, i32
  }
  func.func @transform_2(%arg0: i32) -> (i32, i32) {
    %c0_i32 = arith.constant 0 : i32
    %c0_i32_0 = arith.constant 0 : i32
    %c0_i32_1 = arith.constant 0 : i32
    return %c0_i32, %c0_i32_0 : i32, i32
  }
  func.func @transform_3(%arg0: i32) -> (i32, i32) {
    %c0_i32 = arith.constant 0 : i32
    %c0_i32_0 = arith.constant 0 : i32
    %c0_i32_1 = arith.constant 0 : i32
    return %c0_i32, %c0_i32_0 : i32, i32
  }
  func.func @transform_4(%arg0: i32) -> (i32, i32, i32) {
    %c0_i32 = arith.constant 0 : i32
    %c0_i32_0 = arith.constant 0 : i32
    %c0_i32_1 = arith.constant 0 : i32
    return %arg0, %c0_i32, %c0_i32_0 : i32, i32, i32
  }
}

</mosaic_0001>

<llo_original>
// kernel: tpu_custom_call.1
$region0: #{tpu_custom_call.1}
  #allocation0 [shape = 'u32[]', space=smem, size = 0x4, offset = 0x4, fixed_abs, tag = 'smem constant byte address 0x4 - core index']
  #allocation1 [shape = 'u32[144,128]{1,0:T(1,128)}', space=vmem, size = 0x12000, scoped, tag = 'internal scratch']
  #allocation2 [shape = 'f32[4,16,16]{2,1,0:T(8,128)}', space=vmem, size = 0x8000, scoped, tag = 'scratch operand']
  %s0 = inlined_call_operand.hbm [shape: f32[2,4,16,16], index: 0, kind: input, shape index: {}]
  %s1 = inlined_call_operand.hbm [shape: f32[2,4,256], index: 1, kind: input, shape index: {}]
  %s2 = inlined_call_operand.hbm [shape: f32[16,16], index: 2, kind: input, shape index: {}]
  %s3 = inlined_call_operand.hbm [shape: f32[16,16], index: 3, kind: input, shape index: {}]
  %s4 = inlined_call_operand.hbm [shape: f32[2,4,128], index: 4, kind: output, shape index: {}]
  %s5 = sld [smem:[#allocation0]]
  $region65: #{tpu_custom_call.1} parent=0
    _
  %s7 = ssub.s32 1, %s5
  %s8 = scalar_select 0, %s7, %s5
  $region1: #{tpu_custom_call.1} parent=0
    #allocation3 [shape = 'u8[65536]{0}', space=vmem, size = 0x10000, scoped, tag = 'input window, operand 0']
    #allocation4 [shape = 's32[2]{0}', space=sflag, size = 0x8, scoped, tag = 'scoped memory for tpu_custom_call.1']
    #allocation5 [shape = 's32[2]{0}', space=sflag, size = 0x8, scoped, tag = 'scoped memory for tpu_custom_call.1']
    #allocation6 [shape = 'u8[8192]{0}', space=vmem, size = 0x2000, scoped, tag = 'input window, operand 1']
    #allocation7 [shape = 's32[2]{0}', space=sflag, size = 0x8, scoped, tag = 'scoped memory for tpu_custom_call.1']
    #allocation8 [shape = 'u8[8192]{0}', space=vmem, size = 0x2000, scoped, tag = 'input window, operand 2, single buffered']
    #allocation9 [shape = 'u8[8192]{0}', space=vmem, size = 0x2000, scoped, tag = 'input window, operand 3, single buffered']
    #allocation10 [shape = 's32[1]{0}', space=sflag, size = 0x4, scoped, tag = 'scoped memory for tpu_custom_call.1']
    #allocation11 [shape = 'u8[4096]{0}', space=vmem, size = 0x1000, scoped, tag = 'output window, operand 0']
    %9 = vsyncpa [#allocation4], 0
    %s10 = scalar_lea.sflag [#allocation4], 1
    %11 = vsyncpa %s10, 0
    %12 = vsyncpa [#allocation7], 0
    %s13 = scalar_lea.sflag [#allocation7], 1
    %14 = vsyncpa %s13, 0
    %15 = vsyncpa [#allocation10], 0
    %16 = vsyncpa [#allocation5], 0
    %s17 = scalar_lea.sflag [#allocation5], 1
    %18 = vsyncpa %s17, 0
    loop: start=0, step=1, limit=4
    $region2: #{tpu_custom_call.1} parent=1 // loop_pre_header
      _
    $region3: #{tpu_custom_call.1} parent=1 // loop_header
      %s20 = sphi 0, %s24
      %p21 = scmp.ge.s32.totalorder %s20, 4
      %s30 = sphi 0, %s32
      %s33 = sphi 0, %s30
      %s34 = sphi 0, %s33
      %s50 = sphi 0, %s34
      %s56 = sphi 0, %s58
      %s59 = sphi 0, %s56
      %s60 = sphi 0, %s59
      %s76 = sphi 0, %s60
      %s80 = sphi 0, %s80
      %s82 = sphi 0, %s80
      %s83 = sphi 0, %s82
      %s97 = sphi 0, %s83
      %s101 = sphi 0, %s101
      %s103 = sphi 0, %s101
      %s104 = sphi 0, %s103
      %s118 = sphi 0, %s104
      %s124 = sphi 0, %s126
      %s127 = sphi 0, %s124
      %s128 = sphi 0, %s127
      %s144 = sphi 0, %s128
    $region4: #{tpu_custom_call.1} parent=1 // loop_header_branch
      %23 = sbr.rel (%p21) target = $region8
    $region5: #{tpu_custom_call.1} parent=1 // loop_body
      %s25 = ssub.s32 %s20, 1
      %s26 = ssub.s32 %s20, 2
      %s27 = sadd.s32 %s20, 1
      %s28 = ssub.s32 %s20, %s27
      %p29 = scmp.eq.s32.totalorder %s28, 0
      %s31 = sadd.s32 %s30, 1
      %s32 = scalar_select %p29, %s30, %s31
      %p35 = pneg %p29
      %p36 = scmp.eq.s32.totalorder %s20, 1
      %p37 = por %p35, %p36
      %p38 = scmp.ne.s32.totalorder %s30, %s33
      %p39 = scmp.eq.s32.totalorder %s20, 0
      %p40 = por %p38, %p39
      %p41 = scmp.ne.s32.totalorder %s30, %s33
      %p42 = scmp.eq.s32.totalorder %s25, 1
      %p43 = por %p41, %p42
      %p44 = scmp.ne.s32.totalorder %s33, %s34
      %p45 = scmp.eq.s32.totalorder %s25, 0
      %p46 = por %p44, %p45
      %p47 = scmp.ne.s32.totalorder %s33, %s34
      %p48 = scmp.eq.s32.totalorder %s26, 1
      %p49 = por %p47, %p48
      %p51 = scmp.ne.s32.totalorder %s34, %s50
      %p52 = scmp.eq.s32.totalorder %s26, 0
      %p53 = por %p51, %p52
      %s54 = ssub.s32 %s20, %s27
      %p55 = scmp.eq.s32.totalorder %s54, 0
      %s57 = sadd.s32 %s56, 1
      %s58 = scalar_select %p55, %s56, %s57
      %p61 = pneg %p55
      %p62 = scmp.eq.s32.totalorder %s20, 1
      %p63 = por %p61, %p62
      %p64 = scmp.ne.s32.totalorder %s56, %s59
      %p65 = scmp.eq.s32.totalorder %s20, 0
      %p66 = por %p64, %p65
      %p67 = scmp.ne.s32.totalorder %s56, %s59
      %p68 = scmp.eq.s32.totalorder %s25, 1
      %p69 = por %p67, %p68
      %p70 = scmp.ne.s32.totalorder %s59, %s60
      %p71 = scmp.eq.s32.totalorder %s25, 0
      %p72 = por %p70, %p71
      %p73 = scmp.ne.s32.totalorder %s59, %s60
      %p74 = scmp.eq.s32.totalorder %s26, 1
      %p75 = por %p73, %p74
      %p77 = scmp.ne.s32.totalorder %s60, %s76
      %p78 = scmp.eq.s32.totalorder %s26, 0
      %p79 = por %p77, %p78
      %s81 = sadd.s32 %s80, 1
      %p84 = scmp.eq.s32.totalorder %s20, 1
      %p85 = scmp.ne.s32.totalorder %s80, %s82
      %p86 = scmp.eq.s32.totalorder %s20, 0
      %p87 = por %p85, %p86
      %p88 = scmp.ne.s32.totalorder %s80, %s82
      %p89 = scmp.eq.s32.totalorder %s25, 1
      %p90 = por %p88, %p89
      %p91 = scmp.ne.s32.totalorder %s82, %s83
      %p92 = scmp.eq.s32.totalorder %s25, 0
      %p93 = por %p91, %p92
      %p94 = scmp.ne.s32.totalorder %s82, %s83
      %p95 = scmp.eq.s32.totalorder %s26, 1
      %p96 = por %p94, %p95
      %p98 = scmp.ne.s32.totalorder %s83, %s97
      %p99 = scmp.eq.s32.totalorder %s26, 0
      %p100 = por %p98, %p99
      %s102 = sadd.s32 %s101, 1
      %p105 = scmp.eq.s32.totalorder %s20, 1
      %p106 = scmp.ne.s32.totalorder %s101, %s103
      %p107 = scmp.eq.s32.totalorder %s20, 0
      %p108 = por %p106, %p107
      %p109 = scmp.ne.s32.totalorder %s101, %s103
      %p110 = scmp.eq.s32.totalorder %s25, 1
      %p111 = por %p109, %p110
      %p112 = scmp.ne.s32.totalorder %s103, %s104
      %p113 = scmp.eq.s32.totalorder %s25, 0
      %p114 = por %p112, %p113
      %p115 = scmp.ne.s32.totalorder %s103, %s104
      %p116 = scmp.eq.s32.totalorder %s26, 1
      %p117 = por %p115, %p116
      %p119 = scmp.ne.s32.totalorder %s104, %s118
      %p120 = scmp.eq.s32.totalorder %s26, 0
      %p121 = por %p119, %p120
      %s122 = ssub.s32 %s20, %s27
      %p123 = scmp.eq.s32.totalorder %s122, 0
      %s125 = sadd.s32 %s124, 1
      %s126 = scalar_select %p123, %s124, %s125
      %p129 = pneg %p123
      %p130 = scmp.eq.s32.totalorder %s20, 1
      %p131 = por %p129, %p130
      %p132 = scmp.ne.s32.totalorder %s124, %s127
      %p133 = scmp.eq.s32.totalorder %s20, 0
      %p134 = por %p132, %p133
      %p135 = scmp.ne.s32.totalorder %s124, %s127
      %p136 = scmp.eq.s32.totalorder %s25, 1
      %p137 = por %p135, %p136
      %p138 = scmp.ne.s32.totalorder %s127, %s128
      %p139 = scmp.eq.s32.totalorder %s25, 0
      %p140 = por %p138, %p139
      %p141 = scmp.ne.s32.totalorder %s127, %s128
      %p142 = scmp.eq.s32.totalorder %s26, 1
      %p143 = por %p141, %p142
      %p145 = scmp.ne.s32.totalorder %s128, %s144
      %p146 = scmp.eq.s32.totalorder %s26, 0
      %p147 = por %p145, %p146
      %p148 = scmp.le.s32.totalorder 1, %s20
      %p149 = scmp.lt.s32.totalorder %s20, 3
      %p150 = pnand %p148, %p149
      %p151 = pneg %p150
      // Predicated region
      $region9: #{tpu_custom_call.1} parent=5 // pred_check
        _
      $region10: #{tpu_custom_call.1} parent=5 // pred_check_branch
        %153 = sbr.rel (%p150) target = $region12
      $region11: #{tpu_custom_call.1} parent=5 // pred_region
        %s154 = ssub.s32 %s20, 1
        // Predicated region
        $region13: #{tpu_custom_call.1} parent=11 // pred_check
          %p155 = pneg %p93
        $region14: #{tpu_custom_call.1} parent=11 // pred_check_branch
          %157 = sbr.rel (%p155) target = $region16
        $region15: #{tpu_custom_call.1} parent=11 // pred_region
          %s159 = ssub.s32 256, 256
          %160 = vsyncadd [#allocation7], %s159
          %s161 = sshll.u32 [#allocation8], 4
          %s162 = int_to_ptr.vmem [resolvable:$true] %s161
          %167 = dma.hbm_to_vmem [thread:$0]  %s2, 256, %s162, [#allocation7], 128, 128, 8
        $region16: #{tpu_custom_call.1} parent=11 // pred_fallthru
          _
        // Predicated region
        $region17: #{tpu_custom_call.1} parent=11 // pred_check
          %p168 = pneg %p114
        $region18: #{tpu_custom_call.1} parent=11 // pred_check_branch
          %170 = sbr.rel (%p168) target = $region20
        $region19: #{tpu_custom_call.1} parent=11 // pred_region
          %s172 = ssub.s32 256, 256
          %173 = vsyncadd [#allocation10], %s172
          %s174 = sshll.u32 [#allocation9], 4
          %s175 = int_to_ptr.vmem [resolvable:$true] %s174
          %180 = dma.hbm_to_vmem [thread:$0]  %s3, 256, %s175, [#allocation10], 128, 128, 8
        $region20: #{tpu_custom_call.1} parent=11 // pred_fallthru
          _
      $region12: #{tpu_custom_call.1} parent=5 // pred_fallthru
        _
      %p181 = scmp.lt.s32.totalorder %s20, 2
      // Predicated region
      $region21: #{tpu_custom_call.1} parent=5 // pred_check
        %p182 = pneg %p181
      $region22: #{tpu_custom_call.1} parent=5 // pred_check_branch
        %184 = sbr.rel (%p182) target = $region24
      $region23: #{tpu_custom_call.1} parent=5 // pred_region
        // Predicated region
        $region25: #{tpu_custom_call.1} parent=23 // pred_check
          %p185 = pneg %p40
        $region26: #{tpu_custom_call.1} parent=23 // pred_check_branch
          %187 = sbr.rel (%p185) target = $region28
        $region27: #{tpu_custom_call.1} parent=23 // pred_region
          %s188 = sand.u32 %s30, 1
          %s189 = scalar_lea.sflag [#allocation4], %s188
          %s190 = sand.u32 %s30, 1
          %s191 = smul.addr %s190, 64
          %s192 = scalar_lea.vmem [#allocation3], %s191
          %s194 = ssub.s32 1024, 1024
          %195 = vsyncadd %s189, %s194
          %s196 = smul.addr %s20, 8
          %s197 = smul.addr %s196, 128
          %s198 = scalar_lea.hbm %s0, %s197
          %s199 = sshll.u32 %s192, 4
          %s200 = int_to_ptr.vmem [resolvable:$true] %s199
          %205 = dma.hbm_to_vmem [thread:$0]  %s198, 1024, %s200, %s189, 128, 128, 8
        $region28: #{tpu_custom_call.1} parent=23 // pred_fallthru
          _
        // Predicated region
        $region29: #{tpu_custom_call.1} parent=23 // pred_check
          %p206 = pneg %p66
        $region30: #{tpu_custom_call.1} parent=23 // pred_check_branch
          %208 = sbr.rel (%p206) target = $region32
        $region31: #{tpu_custom_call.1} parent=23 // pred_region
          %s209 = sand.u32 %s20, 1
          %s210 = scalar_lea.sflag [#allocation7], %s209
          %s211 = sand.u32 %s56, 1
          %s212 = smul.addr %s211, 8
          %s213 = scalar_lea.vmem [#allocation6], %s212
          %s215 = ssub.s32 128, 128
          %216 = vsyncadd %s210, %s215
          %s217 = smul.addr %s20, 2
          %s218 = smul.addr %s217, 64
          %s219 = scalar_lea.hbm %s1, %s218
          %s221 = sshll.u32 %s213, 4
          %s222 = int_to_ptr.vmem [resolvable:$true] %s221
          %224 = dma.hbm_to_vmem [thread:$0]  %s219, 128, %s222, %s210
        $region32: #{tpu_custom_call.1} parent=23 // pred_fallthru
          _
      $region24: #{tpu_custom_call.1} parent=5 // pred_fallthru
        _
      %p225 = scmp.le.s32.totalorder 1, %s20
      %p226 = scmp.lt.s32.totalorder %s20, 3
      %p227 = pnand %p225, %p226
      %p228 = pneg %p227
      // Predicated region
      $region33: #{tpu_custom_call.1} parent=5 // pred_check
        _
      $region34: #{tpu_custom_call.1} parent=5 // pred_check_branch
        %230 = sbr.rel (%p227) target = $region36
      $region35: #{tpu_custom_call.1} parent=5 // pred_region
        %s231 = ssub.s32 %s20, 1
        %s232 = sand.u32 %s33, 1
        %s233 = scalar_lea.sflag [#allocation4], %s232
        %s234 = sand.u32 %s33, 1
        %s235 = smul.addr %s234, 64
        %s236 = scalar_lea.vmem [#allocation3], %s235
        // Predicated region
        $region37: #{tpu_custom_call.1} parent=35 // pred_check
          %p237 = pneg %p46
        $region38: #{tpu_custom_call.1} parent=35 // pred_check_branch
          %239 = sbr.rel (%p237) target = $region40
        $region39: #{tpu_custom_call.1} parent=35 // pred_region
          %240 = dma.done %s233, 1024
        $region40: #{tpu_custom_call.1} parent=35 // pred_fallthru
          _
        %s241 = sand.u32 %s25, 1
        %s242 = scalar_lea.sflag [#allocation7], %s241
        %s243 = sand.u32 %s59, 1
        %s244 = smul.addr %s243, 8
        %s245 = scalar_lea.vmem [#allocation6], %s244
        // Predicated region
        $region41: #{tpu_custom_call.1} parent=35 // pred_check
          %p246 = pneg %p72
        $region42: #{tpu_custom_call.1} parent=35 // pred_check_branch
          %248 = sbr.rel (%p246) target = $region44
        $region43: #{tpu_custom_call.1} parent=35 // pred_region
          %249 = dma.done %s242, 128
        $region44: #{tpu_custom_call.1} parent=35 // pred_fallthru
          _
        // Predicated region
        $region45: #{tpu_custom_call.1} parent=35 // pred_check
          %p250 = pneg %p93
        $region46: #{tpu_custom_call.1} parent=35 // pred_check_branch
          %252 = sbr.rel (%p250) target = $region48
        $region47: #{tpu_custom_call.1} parent=35 // pred_region
          %253 = dma.done [#allocation7], 256
        $region48: #{tpu_custom_call.1} parent=35 // pred_fallthru
          _
        // Predicated region
        $region49: #{tpu_custom_call.1} parent=35 // pred_check
          %p254 = pneg %p114
        $region50: #{tpu_custom_call.1} parent=35 // pred_check_branch
          %256 = sbr.rel (%p254) target = $region52
        $region51: #{tpu_custom_call.1} parent=35 // pred_region
          %257 = dma.done [#allocation10], 256
        $region52: #{tpu_custom_call.1} parent=35 // pred_fallthru
          _
        %s258 = sand.u32 %s33, 1
        %s259 = scalar_lea.sflag [#allocation4], %s258
        %s260 = sand.u32 %s33, 1
        %s261 = smul.addr %s260, 64
        %s262 = scalar_lea.vmem [#allocation3], %s261
        %p263 = pneg %p46
        %p264 = pneg %p43
        %s265 = sand.u32 %s25, 1
        %s266 = scalar_lea.sflag [#allocation7], %s265
        %s267 = sand.u32 %s59, 1
        %s268 = smul.addr %s267, 8
        %s269 = scalar_lea.vmem [#allocation6], %s268
        %p270 = pneg %p72
        %p271 = pneg %p69
        %p272 = pneg %p93
        %p273 = pneg %p90
        %p274 = pneg %p114
        %p275 = pneg %p111
        %p276 = pneg %p140
        %p277 = pneg %p137
        %s278 = sand.u32 %s127, 1
        %s279 = scalar_lea.sflag [#allocation5], %s278
        %s280 = sand.u32 %s127, 1
        %s281 = smul.addr %s280, 4
        %s282 = scalar_lea.vmem [#allocation11], %s281
        %v283 = vld [vmem:[%s245] sm:$0xff]
        %v285 = vcombine.high %v283, %v283
        %vm287 = vcmask 1043456
        %v288 = vsel %vm287, %v283, 0.0
        %v289 = vsel %vm287, %v285, 0.0
        %v290 = vadd.f32 %v288, %v289
        %291 = vadd.xlane.f32.xlu0 %v290
        %v292 = vpop.xlane.xlu0 %291
        %293 = vmatprep.subr.mxu0 %v285
        %294 = vmatpush1.xpose.msra.mxu0 %v283
        %295 = vmatprep.subr.mxu0 0.0
        %296 = vmatpush1.xpose.msra.mxu0 0.0
        %297 = vmatprep.subr.mxu0 0.0
        %298 = vmatpush1.xpose.msra.mxu0 0.0
        %299 = vmatprep.subr.mxu0 0.0
        %300 = vmatpush1.xpose.msra.mxu0 0.0
        %301 = vmatprep.subr.mxu0 0.0
        %302 = vmatpush1.xpose.msra.mxu0 0.0
        %303 = vmatprep.subr.mxu0 0.0
        %304 = vmatpush1.xpose.msra.mxu0 0.0
        %305 = vmatprep.subr.mxu0 0.0
        %306 = vmatpush1.xpose.msra.mxu0 0.0
        %307 = vmatprep.subr.mxu0 0.0
        %308 = vmatpush1.xpose.msra.mxu0 0.0
        %309 = vmatprep.subr.mxu0 0.0
        %310 = vmatpush1.xpose.msra.mxu0 0.0
        %311 = vmatprep.subr.mxu0 0.0
        %312 = vmatpush1.xpose.msra.mxu0 0.0
        %313 = vmatprep.subr.mxu0 0.0
        %314 = vmatpush1.xpose.msra.mxu0 0.0
        %315 = vmatprep.subr.mxu0 0.0
        %316 = vmatpush1.xpose.msra.mxu0 0.0
        %317 = vmatprep.subr.mxu0 0.0
        %318 = vmatpush1.xpose.msra.mxu0 0.0
        %319 = vmatprep.subr.mxu0 0.0
        %320 = vmatpush1.xpose.msra.mxu0 0.0
        %321 = vmatprep.subr.mxu0 0.0
        %322 = vmatpush1.xpose.msra.mxu0 0.0
        %323 = vmatprep.subr.mxu0 0.0
        %324 = vmatpush1.xpose.msra.mxu0 0.0
        %325 = vmatprep.subr.mxu0 0.0
        %326 = vmatpush1.xpose.msra.mxu0 0.0
        %327 = vmatprep.subr.mxu0 0.0
        %328 = vmatpush1.xpose.msra.mxu0 0.0
        %329 = vmatprep.subr.mxu0 0.0
        %330 = vmatpush1.xpose.msra.mxu0 0.0
        %331 = vmatprep.subr.mxu0 0.0
        %332 = vmatpush1.xpose.msra.mxu0 0.0
        %333 = vmatprep.subr.mxu0 0.0
        %334 = vmatpush1.xpose.msra.mxu0 0.0
        %335 = vmatprep.subr.mxu0 0.0
        %336 = vmatpush1.xpose.msra.mxu0 0.0
        %337 = vmatprep.subr.mxu0 0.0
        %338 = vmatpush1.xpose.msra.mxu0 0.0
        %339 = vmatprep.subr.mxu0 0.0
        %340 = vmatpush1.xpose.msra.mxu0 0.0
        %341 = vmatprep.subr.mxu0 0.0
        %342 = vmatpush1.xpose.msra.mxu0 0.0
        %343 = vmatprep.subr.mxu0 0.0
        %344 = vmatpush1.xpose.msra.mxu0 0.0
        %345 = vmatprep.subr.mxu0 0.0
        %346 = vmatpush1.xpose.msra.mxu0 0.0
        %347 = vmatprep.subr.mxu0 0.0
        %348 = vmatpush1.xpose.msra.mxu0 0.0
        %349 = vmatprep.subr.mxu0 0.0
        %350 = vmatpush1.xpose.msra.mxu0 0.0
        %351 = vmatprep.subr.mxu0 0.0
        %352 = vmatpush1.xpose.msra.mxu0 0.0
        %353 = vmatprep.subr.mxu0 0.0
        %354 = vmatpush1.xpose.msra.mxu0 0.0
        %355 = vmatprep.subr.mxu0 0.0
        %356 = vmatpush1.xpose.msra.mxu0 0.0
        %357 = vmatprep.mubr.f32.mxu0 %v285
        %358 = vmatmul.mubr.f32.gmra.mrb[0].mxu0 %v283
        %v359 = vpop.f32.mrb[0].mxu0
        %v360 = vadd.f32 0.0, %v359
        %v361 = vpop.f32.mrb[0].mxu0
        %362 = vdwg.mxu0
        %v363 = vmul.f32 %v360, 0.00390625
        %v364 = vmul.f32 %v292, 0.00390625
        %v365 = vadd.f32 %v364, 1e-05
        %v366 = vrcp.pop %v365
        %v367 = vmul.f32 %v363, %v366
        %v368 = vmul.f32 %v367, %v367
        %vm369 = vcmask 27648
        %v370 = vsel %vm369, %v368, 0.0
        %371 = vadd.xlane.f32.xlu0 %v370
        %v372 = vpop.xlane.xlu0 %371
        %v373 = vld [vmem:[%s236] sm:$0xff]
        %v374 = vld [vmem:[%s236 + $0x8] sm:$0xff]
        %v375 = vmul.f32 %v373, %v373
        %v376 = vmul.f32 %v374, %v374
        %v377 = vadd.f32 %v375, 0.0
        %v378 = vadd.f32 %v376, 0.0
        %s379 = scalar_lea.vmem %s236, 16 [#allocation3]
        %v380 = vld [vmem:[%s379] sm:$0xff]
        %v381 = vld [vmem:[%s379 + $0x8] sm:$0xff]
        %v382 = vmul.f32 %v380, %v380
        %v383 = vmul.f32 %v381, %v381
        %v384 = vadd.f32 %v377, %v382
        %v385 = vadd.f32 %v378, %v383
        %s386 = scalar_lea.vmem %s236, 32 [#allocation3]
        %v387 = vld [vmem:[%s386] sm:$0xff]
        %v388 = vld [vmem:[%s386 + $0x8] sm:$0xff]
        %v389 = vmul.f32 %v387, %v387
        %v390 = vmul.f32 %v388, %v388
        %v391 = vadd.f32 %v384, %v389
        %v392 = vadd.f32 %v385, %v390
        %s393 = scalar_lea.vmem %s236, 48 [#allocation3]
        %v394 = vld [vmem:[%s393] sm:$0xff]
        %v395 = vld [vmem:[%s393 + $0x8] sm:$0xff]
        %v396 = vmul.f32 %v394, %v394
        %v397 = vmul.f32 %v395, %v395
        %v398 = vadd.f32 %v391, %v396
        %v399 = vadd.f32 %v392, %v397
        %v400 = vld [vmem:[#allocation9] sm:$0xff]
        %v401 = vld [vmem:[#allocation9 + $0x8] sm:$0xff]
        %v402 = vld [vmem:[#allocation8] sm:$0xff]
        %v403 = vld [vmem:[#allocation8 + $0x8] sm:$0xff]
        %v404 = vld [vmem:[%s236 + $0x10] sm:$0xff]
        %v405 = vld [vmem:[%s236 + $0x18] sm:$0xff]
        %v406 = vld [vmem:[%s236 + $0x20] sm:$0xff]
        %v407 = vld [vmem:[%s236 + $0x28] sm:$0xff]
        %v408 = vld [vmem:[%s236 + $0x30] sm:$0xff]
        %v409 = vld [vmem:[%s236 + $0x38] sm:$0xff]
        %vm410 = vcmask 130048
        %v412 = vsel %vm410, %v373, 0
        %v415 = vsel %vm410, %v374, 0
        %v418 = vsel %vm410, %v404, 0
        %v421 = vsel %vm410, %v405, 0
        %v424 = vsel %vm410, %v406, 0
        %v427 = vsel %vm410, %v407, 0
        %v430 = vsel %vm410, %v408, 0
        %v433 = vsel %vm410, %v409, 0
        %435 = vmatprep.subr.mxu0 0.0
        %436 = vmatpush1.msra.mxu0 %v400
        %437 = vmatprep.subr.mxu0 0.0
        %438 = vmatpush1.msra.mxu0 %v401
        %439 = vmatprep.subr.mxu0 0.0
        %440 = vmatpush1.msra.mxu0 0.0
        %441 = vmatprep.subr.mxu0 0.0
        %442 = vmatpush1.msra.mxu0 0.0
        %443 = vmatprep.subr.mxu0 0.0
        %444 = vmatpush1.msra.mxu0 0.0
        %445 = vmatprep.subr.mxu0 0.0
        %446 = vmatpush1.msra.mxu0 0.0
        %447 = vmatprep.subr.mxu0 0.0
        %448 = vmatpush1.msra.mxu0 0.0
        %449 = vmatprep.subr.mxu0 0.0
        %450 = vmatpush1.msra.mxu0 0.0
        %451 = vmatprep.subr.mxu0 0.0
        %452 = vmatpush1.msra.mxu0 0.0
        %453 = vmatprep.subr.mxu0 0.0
        %454 = vmatpush1.msra.mxu0 0.0
        %455 = vmatprep.subr.mxu0 0.0
        %456 = vmatpush1.msra.mxu0 0.0
        %457 = vmatprep.subr.mxu0 0.0
        %458 = vmatpush1.msra.mxu0 0.0
        %459 = vmatprep.subr.mxu0 0.0
        %460 = vmatpush1.msra.mxu0 0.0
        %461 = vmatprep.subr.mxu0 0.0
        %462 = vmatpush1.msra.mxu0 0.0
        %463 = vmatprep.subr.mxu0 0.0
        %464 = vmatpush1.msra.mxu0 0.0
        %465 = vmatprep.subr.mxu0 0.0
        %466 = vmatpush1.msra.mxu0 0.0
        %467 = vmatprep.subr.mxu0 0.0
        %468 = vmatpush1.msra.mxu0 0.0
        %469 = vmatprep.subr.mxu0 0.0
        %470 = vmatpush1.msra.mxu0 0.0
        %471 = vmatprep.subr.mxu0 0.0
        %472 = vmatpush1.msra.mxu0 0.0
        %473 = vmatprep.subr.mxu0 0.0
        %474 = vmatpush1.msra.mxu0 0.0
        %475 = vmatprep.subr.mxu0 0.0
        %476 = vmatpush1.msra.mxu0 0.0
        %477 = vmatprep.subr.mxu0 0.0
        %478 = vmatpush1.msra.mxu0 0.0
        %479 = vmatprep.subr.mxu0 0.0
        %480 = vmatpush1.msra.mxu0 0.0
        %481 = vmatprep.subr.mxu0 0.0
        %482 = vmatpush1.msra.mxu0 0.0
        %483 = vmatprep.subr.mxu0 0.0
        %484 = vmatpush1.msra.mxu0 0.0
        %485 = vmatprep.subr.mxu0 0.0
        %486 = vmatpush1.msra.mxu0 0.0
        %487 = vmatprep.subr.mxu0 0.0
        %488 = vmatpush1.msra.mxu0 0.0
        %489 = vmatprep.subr.mxu0 0.0
        %490 = vmatpush1.msra.mxu0 0.0
        %491 = vmatprep.subr.mxu0 0.0
        %492 = vmatpush1.msra.mxu0 0.0
        %493 = vmatprep.subr.mxu0 0.0
        %494 = vmatpush1.msra.mxu0 0.0
        %495 = vmatprep.subr.mxu0 0.0
        %496 = vmatpush1.msra.mxu0 0.0
        %497 = vmatprep.subr.mxu0 0.0
        %498 = vmatpush1.msra.mxu0 0.0
        %499 = vmatprep.mubr.f32.mxu0 0.0
        %500 = vmatmul.mubr.f32.gmra.mrb[0].mxu0 %v412
        %v501 = vpop.f32.mrb[0].mxu0
        %v502 = vadd.f32 0.0, %v501
        %v503 = vpop.f32.mrb[0].mxu0
        %504 = vmatprep.mubr.f32.mxu0 0.0
        %505 = vmatmul.mubr.f32.gmra.mrb[0].mxu0 %v415
        %v506 = vpop.f32.mrb[0].mxu0
        %v507 = vadd.f32 0.0, %v506
        %v508 = vpop.f32.mrb[0].mxu0
        %509 = vmatprep.mubr.f32.mxu0 0.0
        %510 = vmatmul.mubr.f32.gmra.mrb[0].mxu0 %v418
        %v511 = vpop.f32.mrb[0].mxu0
        %v512 = vadd.f32 0.0, %v511
        %v513 = vpop.f32.mrb[0].mxu0
        %514 = vmatprep.mubr.f32.mxu0 0.0
        %515 = vmatmul.mubr.f32.gmra.mrb[0].mxu0 %v421
        %v516 = vpop.f32.mrb[0].mxu0
        %v517 = vadd.f32 0.0, %v516
        %v518 = vpop.f32.mrb[0].mxu0
        %519 = vmatprep.mubr.f32.mxu0 0.0
        %520 = vmatmul.mubr.f32.gmra.mrb[0].mxu0 %v424
        %v521 = vpop.f32.mrb[0].mxu0
        %v522 = vadd.f32 0.0, %v521
        %v523 = vpop.f32.mrb[0].mxu0
        %524 = vmatprep.mubr.f32.mxu0 0.0
        %525 = vmatmul.mubr.f32.gmra.mrb[0].mxu0 %v427
        %v526 = vpop.f32.mrb[0].mxu0
        %v527 = vadd.f32 0.0, %v526
        %v528 = vpop.f32.mrb[0].mxu0
        %529 = vmatprep.mubr.f32.mxu0 0.0
        %530 = vmatmul.mubr.f32.gmra.mrb[0].mxu0 %v430
        %v531 = vpop.f32.mrb[0].mxu0
        %v532 = vadd.f32 0.0, %v531
        %v533 = vpop.f32.mrb[0].mxu0
        %534 = vmatprep.mubr.f32.mxu0 0.0
        %535 = vmatmul.mubr.f32.gmra.mrb[0].mxu0 %v433
        %v536 = vpop.f32.mrb[0].mxu0
        %v537 = vadd.f32 0.0, %v536
        %v538 = vpop.f32.mrb[0].mxu0
        %539 = vdwg.mxu0
        %s541 = vtos %v367
        %v542 = vstv %s541
        %v544 = vmul.f32 %v542, %v373
        %v545 = vmul.f32 %v542, %v374
        %v546 = vadd.f32 %v544, 0.0
        %v547 = vadd.f32 %v545, 0.0
        %548 = vrot.lane.b32.xlu0 %v367, 127
        %v549 = vpop.permute.xlu0 %548
        %s550 = vtos %v549
        %v551 = vstv %s550
        %v553 = vmul.f32 %v551, %v380
        %v554 = vmul.f32 %v551, %v381
        %v555 = vadd.f32 %v546, %v553
        %v556 = vadd.f32 %v547, %v554
        %557 = vrot.lane.b32.xlu0 %v367, 126
        %v558 = vpop.permute.xlu0 %557
        %s559 = vtos %v558
        %v560 = vstv %s559
        %v562 = vmul.f32 %v560, %v387
        %v563 = vmul.f32 %v560, %v388
        %v564 = vadd.f32 %v555, %v562
        %v565 = vadd.f32 %v556, %v563
        %566 = vrot.lane.b32.xlu0 %v367, 125
        %v567 = vpop.permute.xlu0 %566
        %s568 = vtos %v567
        %v569 = vstv %s568
        %v571 = vmul.f32 %v569, %v394
        %v572 = vmul.f32 %v569, %v395
        %v573 = vadd.f32 %v564, %v571
        %v574 = vadd.f32 %v565, %v572
        %v575 = vmul.f32 %v573, 2.0
        %v576 = vmul.f32 %v574, 2.0
        %v577 = vsub.f32 %v398, %v575
        %v578 = vsub.f32 %v399, %v576
        %v579 = vlaneseq
        %v580 = vshrl.u32 %v579, 7
        %v581 = vsub.s32 0, %v580
        %v582 = vrot.slane %v372, %v581
        %v583 = vadd.f32 %v577, %v582
        %v584 = vadd.f32 %v578, %v582
        %v585 = vmul.f32 %v583, %v583
        %v586 = vmul.f32 %v584, %v584
        %v587 = vsub.f32 0.0, %v585
        %v588 = vsub.f32 0.0, %v586
        %v589 = vmul.f32 %v587, 0.01
        %v590 = vmul.f32 %v588, 0.01
        %v591 = vmul.f32 %v589, 1.442695
        %v592 = vpow.pop %v591
        %v593 = vmul.f32 %v590, 1.442695
        %v594 = vpow.pop %v593
        %v596 = vsel %vm410, %v402, 0
        %v599 = vsel %vm410, %v403, 0
        %601 = vmatprep.subr.mxu0 0.0
        %602 = vmatpush1.msra.mxu0 %v502
        %603 = vmatprep.subr.mxu0 0.0
        %604 = vmatpush1.msra.mxu0 %v507
        %605 = vmatprep.subr.mxu0 0.0
        %606 = vmatpush1.msra.mxu0 0.0
        %607 = vmatprep.subr.mxu0 0.0
        %608 = vmatpush1.msra.mxu0 0.0
        %609 = vmatprep.subr.mxu0 0.0
        %610 = vmatpush1.msra.mxu0 0.0
        %611 = vmatprep.subr.mxu0 0.0
        %612 = vmatpush1.msra.mxu0 0.0
        %613 = vmatprep.subr.mxu0 0.0
        %614 = vmatpush1.msra.mxu0 0.0
        %615 = vmatprep.subr.mxu0 0.0
        %616 = vmatpush1.msra.mxu0 0.0
        %617 = vmatprep.subr.mxu0 0.0
        %618 = vmatpush1.msra.mxu0 0.0
        %619 = vmatprep.subr.mxu0 0.0
        %620 = vmatpush1.msra.mxu0 0.0
        %621 = vmatprep.subr.mxu0 0.0
        %622 = vmatpush1.msra.mxu0 0.0
        %623 = vmatprep.subr.mxu0 0.0
        %624 = vmatpush1.msra.mxu0 0.0
        %625 = vmatprep.subr.mxu0 0.0
        %626 = vmatpush1.msra.mxu0 0.0
        %627 = vmatprep.subr.mxu0 0.0
        %628 = vmatpush1.msra.mxu0 0.0
        %629 = vmatprep.subr.mxu0 0.0
        %630 = vmatpush1.msra.mxu0 0.0
        %631 = vmatprep.subr.mxu0 0.0
        %632 = vmatpush1.msra.mxu0 0.0
        %633 = vmatprep.subr.mxu0 0.0
        %634 = vmatpush1.msra.mxu0 0.0
        %635 = vmatprep.subr.mxu0 0.0
        %636 = vmatpush1.msra.mxu0 0.0
        %637 = vmatprep.subr.mxu0 0.0
        %638 = vmatpush1.msra.mxu0 0.0
        %639 = vmatprep.subr.mxu0 0.0
        %640 = vmatpush1.msra.mxu0 0.0
        %641 = vmatprep.subr.mxu0 0.0
        %642 = vmatpush1.msra.mxu0 0.0
        %643 = vmatprep.subr.mxu0 0.0
        %644 = vmatpush1.msra.mxu0 0.0
        %645 = vmatprep.subr.mxu0 0.0
        %646 = vmatpush1.msra.mxu0 0.0
        %647 = vmatprep.subr.mxu0 0.0
        %648 = vmatpush1.msra.mxu0 0.0
        %649 = vmatprep.subr.mxu0 0.0
        %650 = vmatpush1.msra.mxu0 0.0
        %651 = vmatprep.subr.mxu0 0.0
        %652 = vmatpush1.msra.mxu0 0.0
        %653 = vmatprep.subr.mxu0 0.0
        %654 = vmatpush1.msra.mxu0 0.0
        %655 = vmatprep.subr.mxu0 0.0
        %656 = vmatpush1.msra.mxu0 0.0
        %657 = vmatprep.subr.mxu0 0.0
        %658 = vmatpush1.msra.mxu0 0.0
        %659 = vmatprep.subr.mxu0 0.0
        %660 = vmatpush1.msra.mxu0 0.0
        %661 = vmatprep.subr.mxu0 0.0
        %662 = vmatpush1.msra.mxu0 0.0
        %663 = vmatprep.subr.mxu0 0.0
        %664 = vmatpush1.msra.mxu0 0.0
        %665 = vmatprep.mubr.f32.mxu0 0.0
        %666 = vmatmul.mubr.f32.gmra.mrb[0].mxu0 %v596
        %v667 = vpop.f32.mrb[0].mxu0
        %v668 = vadd.f32 0.0, %v667
        %v669 = vpop.f32.mrb[0].mxu0
        %670 = vmatprep.mubr.f32.mxu0 0.0
        %671 = vmatmul.mubr.f32.gmra.mrb[0].mxu0 %v599
        %v672 = vpop.f32.mrb[0].mxu0
        %v673 = vadd.f32 0.0, %v672
        %v674 = vpop.f32.mrb[0].mxu0
        %675 = vdwg.mxu0
        %v676 = vmul.f32 %v668, %v592
        %v677 = vmul.f32 %v673, %v594
        %678 = vst.msk [vmem:[#allocation2] sm:$0xff] %vm410, %v676
        %679 = vst.msk [vmem:[#allocation2 + $0x8] sm:$0xff] %vm410, %v677
        %v680 = vld [vmem:[%s236] sm:$0xff]
        %v681 = vld [vmem:[%s236 + $0x8] sm:$0xff]
        %v682 = vrot.slane %v367, 1
        %s683 = vtos %v682
        %v684 = vstv %s683
        %v686 = vmul.f32 %v684, %v680
        %v687 = vmul.f32 %v684, %v681
        %v688 = vadd.f32 %v686, 0.0
        %v689 = vadd.f32 %v687, 0.0
        %v690 = vld [vmem:[%s379] sm:$0xff]
        %v691 = vld [vmem:[%s379 + $0x8] sm:$0xff]
        %692 = vrot.lane.b32.xlu0 %v682, 127
        %v693 = vpop.permute.xlu0 %692
        %s694 = vtos %v693
        %v695 = vstv %s694
        %v697 = vmul.f32 %v695, %v690
        %v698 = vmul.f32 %v695, %v691
        %v699 = vadd.f32 %v688, %v697
        %v700 = vadd.f32 %v689, %v698
        %v701 = vld [vmem:[%s386] sm:$0xff]
        %v702 = vld [vmem:[%s386 + $0x8] sm:$0xff]
        %703 = vrot.lane.b32.xlu0 %v682, 126
        %v704 = vpop.permute.xlu0 %703
        %s705 = vtos %v704
        %v706 = vstv %s705
        %v708 = vmul.f32 %v706, %v701
        %v709 = vmul.f32 %v706, %v702
        %v710 = vadd.f32 %v699, %v708
        %v711 = vadd.f32 %v700, %v709
        %v712 = vld [vmem:[%s393] sm:$0xff]
        %v713 = vld [vmem:[%s393 + $0x8] sm:$0xff]
        %714 = vrot.lane.b32.xlu0 %v682, 125
        %v715 = vpop.permute.xlu0 %714
        %s716 = vtos %v715
        %v717 = vstv %s716
        %v719 = vmul.f32 %v717, %v712
        %v720 = vmul.f32 %v717, %v713
        %v721 = vadd.f32 %v710, %v719
        %v722 = vadd.f32 %v711, %v720
        %v723 = vmul.f32 %v721, 2.0
        %v724 = vmul.f32 %v722, 2.0
        %v725 = vsub.f32 %v398, %v723
        %v726 = vsub.f32 %v399, %v724
        %v727 = vlaneseq
        %v728 = vshrl.u32 %v727, 7
        %v729 = vsub.s32 1, %v728
        %v730 = vrot.slane %v372, %v729
        %v731 = vadd.f32 %v725, %v730
        %v732 = vadd.f32 %v726, %v730
        %v733 = vmul.f32 %v731, %v731
        %v734 = vmul.f32 %v732, %v732
        %v735 = vsub.f32 0.0, %v733
        %v736 = vsub.f32 0.0, %v734
        %v737 = vmul.f32 %v735, 0.01
        %v738 = vmul.f32 %v736, 0.01
        %v739 = vmul.f32 %v737, 1.442695
        %v740 = vpow.pop %v739
        %v741 = vmul.f32 %v738, 1.442695
        %v742 = vpow.pop %v741
        %743 = vmatprep.subr.mxu0 0.0
        %744 = vmatpush1.msra.mxu0 %v512
        %745 = vmatprep.subr.mxu0 0.0
        %746 = vmatpush1.msra.mxu0 %v517
        %747 = vmatprep.subr.mxu0 0.0
        %748 = vmatpush1.msra.mxu0 0.0
        %749 = vmatprep.subr.mxu0 0.0
        %750 = vmatpush1.msra.mxu0 0.0
        %751 = vmatprep.subr.mxu0 0.0
        %752 = vmatpush1.msra.mxu0 0.0
        %753 = vmatprep.subr.mxu0 0.0
        %754 = vmatpush1.msra.mxu0 0.0
        %755 = vmatprep.subr.mxu0 0.0
        %756 = vmatpush1.msra.mxu0 0.0
        %757 = vmatprep.subr.mxu0 0.0
        %758 = vmatpush1.msra.mxu0 0.0
        %759 = vmatprep.subr.mxu0 0.0
        %760 = vmatpush1.msra.mxu0 0.0
        %761 = vmatprep.subr.mxu0 0.0
        %762 = vmatpush1.msra.mxu0 0.0
        %763 = vmatprep.subr.mxu0 0.0
        %764 = vmatpush1.msra.mxu0 0.0
        %765 = vmatprep.subr.mxu0 0.0
        %766 = vmatpush1.msra.mxu0 0.0
        %767 = vmatprep.subr.mxu0 0.0
        %768 = vmatpush1.msra.mxu0 0.0
        %769 = vmatprep.subr.mxu0 0.0
        %770 = vmatpush1.msra.mxu0 0.0
        %771 = vmatprep.subr.mxu0 0.0
        %772 = vmatpush1.msra.mxu0 0.0
        %773 = vmatprep.subr.mxu0 0.0
        %774 = vmatpush1.msra.mxu0 0.0
        %775 = vmatprep.subr.mxu0 0.0
        %776 = vmatpush1.msra.mxu0 0.0
        %777 = vmatprep.subr.mxu0 0.0
        %778 = vmatpush1.msra.mxu0 0.0
        %779 = vmatprep.subr.mxu0 0.0
        %780 = vmatpush1.msra.mxu0 0.0
        %781 = vmatprep.subr.mxu0 0.0
        %782 = vmatpush1.msra.mxu0 0.0
        %783 = vmatprep.subr.mxu0 0.0
        %784 = vmatpush1.msra.mxu0 0.0
        %785 = vmatprep.subr.mxu0 0.0
        %786 = vmatpush1.msra.mxu0 0.0
        %787 = vmatprep.subr.mxu0 0.0
        %788 = vmatpush1.msra.mxu0 0.0
        %789 = vmatprep.subr.mxu0 0.0
        %790 = vmatpush1.msra.mxu0 0.0
        %791 = vmatprep.subr.mxu0 0.0
        %792 = vmatpush1.msra.mxu0 0.0
        %793 = vmatprep.subr.mxu0 0.0
        %794 = vmatpush1.msra.mxu0 0.0
        %795 = vmatprep.subr.mxu0 0.0
        %796 = vmatpush1.msra.mxu0 0.0
        %797 = vmatprep.subr.mxu0 0.0
        %798 = vmatpush1.msra.mxu0 0.0
        %799 = vmatprep.subr.mxu0 0.0
        %800 = vmatpush1.msra.mxu0 0.0
        %801 = vmatprep.subr.mxu0 0.0
        %802 = vmatpush1.msra.mxu0 0.0
        %803 = vmatprep.subr.mxu0 0.0
        %804 = vmatpush1.msra.mxu0 0.0
        %805 = vmatprep.subr.mxu0 0.0
        %806 = vmatpush1.msra.mxu0 0.0
        %807 = vmatprep.mubr.f32.mxu0 0.0
        %808 = vmatmul.mubr.f32.gmra.mrb[0].mxu0 %v596
        %v809 = vpop.f32.mrb[0].mxu0
        %v810 = vadd.f32 0.0, %v809
        %v811 = vpop.f32.mrb[0].mxu0
        %812 = vmatprep.mubr.f32.mxu0 0.0
        %813 = vmatmul.mubr.f32.gmra.mrb[0].mxu0 %v599
        %v814 = vpop.f32.mrb[0].mxu0
        %v815 = vadd.f32 0.0, %v814
        %v816 = vpop.f32.mrb[0].mxu0
        %817 = vdwg.mxu0
        %v818 = vmul.f32 %v810, %v740
        %v819 = vmul.f32 %v815, %v742
        %s820 = scalar_lea.vmem [#allocation2], 16
        %821 = vst.msk [vmem:[%s820] sm:$0xff] %vm410, %v818
        %822 = vst.msk [vmem:[%s820 + $0x8] sm:$0xff] %vm410, %v819
        %v823 = vld [vmem:[%s236] sm:$0xff]
        %v824 = vld [vmem:[%s236 + $0x8] sm:$0xff]
        %v825 = vrot.slane %v367, 2
        %s826 = vtos %v825
        %v827 = vstv %s826
        %v829 = vmul.f32 %v827, %v823
        %v830 = vmul.f32 %v827, %v824
        %v831 = vadd.f32 %v829, 0.0
        %v832 = vadd.f32 %v830, 0.0
        %v833 = vld [vmem:[%s379] sm:$0xff]
        %v834 = vld [vmem:[%s379 + $0x8] sm:$0xff]
        %835 = vrot.lane.b32.xlu0 %v825, 127
        %v836 = vpop.permute.xlu0 %835
        %s837 = vtos %v836
        %v838 = vstv %s837
        %v840 = vmul.f32 %v838, %v833
        %v841 = vmul.f32 %v838, %v834
        %v842 = vadd.f32 %v831, %v840
        %v843 = vadd.f32 %v832, %v841
        %v844 = vld [vmem:[%s386] sm:$0xff]
        %v845 = vld [vmem:[%s386 + $0x8] sm:$0xff]
        %846 = vrot.lane.b32.xlu0 %v825, 126
        %v847 = vpop.permute.xlu0 %846
        %s848 = vtos %v847
        %v849 = vstv %s848
        %v851 = vmul.f32 %v849, %v844
        %v852 = vmul.f32 %v849, %v845
        %v853 = vadd.f32 %v842, %v851
        %v854 = vadd.f32 %v843, %v852
        %v855 = vld [vmem:[%s393] sm:$0xff]
        %v856 = vld [vmem:[%s393 + $0x8] sm:$0xff]
        %857 = vrot.lane.b32.xlu0 %v825, 125
        %v858 = vpop.permute.xlu0 %857
        %s859 = vtos %v858
        %v860 = vstv %s859
        %v862 = vmul.f32 %v860, %v855
        %v863 = vmul.f32 %v860, %v856
        %v864 = vadd.f32 %v853, %v862
        %v865 = vadd.f32 %v854, %v863
        %v866 = vmul.f32 %v864, 2.0
        %v867 = vmul.f32 %v865, 2.0
        %v868 = vsub.f32 %v398, %v866
        %v869 = vsub.f32 %v399, %v867
        %v870 = vlaneseq
        %v871 = vshrl.u32 %v870, 7
        %v872 = vsub.s32 2, %v871
        %v873 = vrot.slane %v372, %v872
        %v874 = vadd.f32 %v868, %v873
        %v875 = vadd.f32 %v869, %v873
        %v876 = vmul.f32 %v874, %v874
        %v877 = vmul.f32 %v875, %v875
        %v878 = vsub.f32 0.0, %v876
        %v879 = vsub.f32 0.0, %v877
        %v880 = vmul.f32 %v878, 0.01
        %v881 = vmul.f32 %v879, 0.01
        %v882 = vmul.f32 %v880, 1.442695
        %v883 = vpow.pop %v882
        %v884 = vmul.f32 %v881, 1.442695
        %v885 = vpow.pop %v884
        %886 = vmatprep.subr.mxu0 0.0
        %887 = vmatpush1.msra.mxu0 %v522
        %888 = vmatprep.subr.mxu0 0.0
        %889 = vmatpush1.msra.mxu0 %v527
        %890 = vmatprep.subr.mxu0 0.0
        %891 = vmatpush1.msra.mxu0 0.0
        %892 = vmatprep.subr.mxu0 0.0
        %893 = vmatpush1.msra.mxu0 0.0
        %894 = vmatprep.subr.mxu0 0.0
        %895 = vmatpush1.msra.mxu0 0.0
        %896 = vmatprep.subr.mxu0 0.0
        %897 = vmatpush1.msra.mxu0 0.0
        %898 = vmatprep.subr.mxu0 0.0
        %899 = vmatpush1.msra.mxu0 0.0
        %900 = vmatprep.subr.mxu0 0.0
        %901 = vmatpush1.msra.mxu0 0.0
        %902 = vmatprep.subr.mxu0 0.0
        %903 = vmatpush1.msra.mxu0 0.0
        %904 = vmatprep.subr.mxu0 0.0
        %905 = vmatpush1.msra.mxu0 0.0
        %906 = vmatprep.subr.mxu0 0.0
        %907 = vmatpush1.msra.mxu0 0.0
        %908 = vmatprep.subr.mxu0 0.0
        %909 = vmatpush1.msra.mxu0 0.0
        %910 = vmatprep.subr.mxu0 0.0
        %911 = vmatpush1.msra.mxu0 0.0
        %912 = vmatprep.subr.mxu0 0.0
        %913 = vmatpush1.msra.mxu0 0.0
        %914 = vmatprep.subr.mxu0 0.0
        %915 = vmatpush1.msra.mxu0 0.0
        %916 = vmatprep.subr.mxu0 0.0
        %917 = vmatpush1.msra.mxu0 0.0
        %918 = vmatprep.subr.mxu0 0.0
        %919 = vmatpush1.msra.mxu0 0.0
        %920 = vmatprep.subr.mxu0 0.0
        %921 = vmatpush1.msra.mxu0 0.0
        %922 = vmatprep.subr.mxu0 0.0
        %923 = vmatpush1.msra.mxu0 0.0
        %924 = vmatprep.subr.mxu0 0.0
        %925 = vmatpush1.msra.mxu0 0.0
        %926 = vmatprep.subr.mxu0 0.0
        %927 = vmatpush1.msra.mxu0 0.0
        %928 = vmatprep.subr.mxu0 0.0
        %929 = vmatpush1.msra.mxu0 0.0
        %930 = vmatprep.subr.mxu0 0.0
        %931 = vmatpush1.msra.mxu0 0.0
        %932 = vmatprep.subr.mxu0 0.0
        %933 = vmatpush1.msra.mxu0 0.0
        %934 = vmatprep.subr.mxu0 0.0
        %935 = vmatpush1.msra.mxu0 0.0
        %936 = vmatprep.subr.mxu0 0.0
        %937 = vmatpush1.msra.mxu0 0.0
        %938 = vmatprep.subr.mxu0 0.0
        %939 = vmatpush1.msra.mxu0 0.0
        %940 = vmatprep.subr.mxu0 0.0
        %941 = vmatpush1.msra.mxu0 0.0
        %942 = vmatprep.subr.mxu0 0.0
        %943 = vmatpush1.msra.mxu0 0.0
        %944 = vmatprep.subr.mxu0 0.0
        %945 = vmatpush1.msra.mxu0 0.0
        %946 = vmatprep.subr.mxu0 0.0
        %947 = vmatpush1.msra.mxu0 0.0
        %948 = vmatprep.subr.mxu0 0.0
        %949 = vmatpush1.msra.mxu0 0.0
        %950 = vmatprep.mubr.f32.mxu0 0.0
        %951 = vmatmul.mubr.f32.gmra.mrb[0].mxu0 %v596
        %v952 = vpop.f32.mrb[0].mxu0
        %v953 = vadd.f32 0.0, %v952
        %v954 = vpop.f32.mrb[0].mxu0
        %955 = vmatprep.mubr.f32.mxu0 0.0
        %956 = vmatmul.mubr.f32.gmra.mrb[0].mxu0 %v599
        %v957 = vpop.f32.mrb[0].mxu0
        %v958 = vadd.f32 0.0, %v957
        %v959 = vpop.f32.mrb[0].mxu0
        %960 = vdwg.mxu0
        %v961 = vmul.f32 %v953, %v883
        %v962 = vmul.f32 %v958, %v885
        %s963 = scalar_lea.vmem [#allocation2], 32
        %964 = vst.msk [vmem:[%s963] sm:$0xff] %vm410, %v961
        %965 = vst.msk [vmem:[%s963 + $0x8] sm:$0xff] %vm410, %v962
        %v966 = vld [vmem:[%s236] sm:$0xff]
        %v967 = vld [vmem:[%s236 + $0x8] sm:$0xff]
        %v968 = vrot.slane %v367, 3
        %s969 = vtos %v968
        %v970 = vstv %s969
        %v972 = vmul.f32 %v970, %v966
        %v973 = vmul.f32 %v970, %v967
        %v974 = vadd.f32 %v972, 0.0
        %v975 = vadd.f32 %v973, 0.0
        %v976 = vld [vmem:[%s379] sm:$0xff]
        %v977 = vld [vmem:[%s379 + $0x8] sm:$0xff]
        %978 = vrot.lane.b32.xlu0 %v968, 127
        %v979 = vpop.permute.xlu0 %978
        %s980 = vtos %v979
        %v981 = vstv %s980
        %v983 = vmul.f32 %v981, %v976
        %v984 = vmul.f32 %v981, %v977
        %v985 = vadd.f32 %v974, %v983
        %v986 = vadd.f32 %v975, %v984
        %v987 = vld [vmem:[%s386] sm:$0xff]
        %v988 = vld [vmem:[%s386 + $0x8] sm:$0xff]
        %989 = vrot.lane.b32.xlu0 %v968, 126
        %v990 = vpop.permute.xlu0 %989
        %s991 = vtos %v990
        %v992 = vstv %s991
        %v994 = vmul.f32 %v992, %v987
        %v995 = vmul.f32 %v992, %v988
        %v996 = vadd.f32 %v985, %v994
        %v997 = vadd.f32 %v986, %v995
        %v998 = vld [vmem:[%s393] sm:$0xff]
        %v999 = vld [vmem:[%s393 + $0x8] sm:$0xff]
        %1000 = vrot.lane.b32.xlu0 %v968, 125
        %v1001 = vpop.permute.xlu0 %1000
        %s1002 = vtos %v1001
        %v1003 = vstv %s1002
        %v1005 = vmul.f32 %v1003, %v998
        %v1006 = vmul.f32 %v1003, %v999
        %v1007 = vadd.f32 %v996, %v1005
        %v1008 = vadd.f32 %v997, %v1006
        %v1009 = vmul.f32 %v1007, 2.0
        %v1010 = vmul.f32 %v1008, 2.0
        %v1011 = vsub.f32 %v398, %v1009
        %v1012 = vsub.f32 %v399, %v1010
        %v1013 = vlaneseq
        %v1014 = vshrl.u32 %v1013, 7
        %v1015 = vsub.s32 3, %v1014
        %v1016 = vrot.slane %v372, %v1015
        %v1017 = vadd.f32 %v1011, %v1016
        %v1018 = vadd.f32 %v1012, %v1016
        %v1019 = vmul.f32 %v1017, %v1017
        %v1020 = vmul.f32 %v1018, %v1018
        %v1021 = vsub.f32 0.0, %v1019
        %v1022 = vsub.f32 0.0, %v1020
        %v1023 = vmul.f32 %v1021, 0.01
        %v1024 = vmul.f32 %v1022, 0.01
        %v1025 = vmul.f32 %v1023, 1.442695
        %v1026 = vpow.pop %v1025
        %v1027 = vmul.f32 %v1024, 1.442695
        %v1028 = vpow.pop %v1027
        %1029 = vmatprep.subr.mxu0 0.0
        %1030 = vmatpush1.msra.mxu0 %v532
        %1031 = vmatprep.subr.mxu0 0.0
        %1032 = vmatpush1.msra.mxu0 %v537
        %1033 = vmatprep.subr.mxu0 0.0
        %1034 = vmatpush1.msra.mxu0 0.0
        %1035 = vmatprep.subr.mxu0 0.0
        %1036 = vmatpush1.msra.mxu0 0.0
        %1037 = vmatprep.subr.mxu0 0.0
        %1038 = vmatpush1.msra.mxu0 0.0
        %1039 = vmatprep.subr.mxu0 0.0
        %1040 = vmatpush1.msra.mxu0 0.0
        %1041 = vmatprep.subr.mxu0 0.0
        %1042 = vmatpush1.msra.mxu0 0.0
        %1043 = vmatprep.subr.mxu0 0.0
        %1044 = vmatpush1.msra.mxu0 0.0
        %1045 = vmatprep.subr.mxu0 0.0
        %1046 = vmatpush1.msra.mxu0 0.0
        %1047 = vmatprep.subr.mxu0 0.0
        %1048 = vmatpush1.msra.mxu0 0.0
        %1049 = vmatprep.subr.mxu0 0.0
        %1050 = vmatpush1.msra.mxu0 0.0
        %1051 = vmatprep.subr.mxu0 0.0
        %1052 = vmatpush1.msra.mxu0 0.0
        %1053 = vmatprep.subr.mxu0 0.0
        %1054 = vmatpush1.msra.mxu0 0.0
        %1055 = vmatprep.subr.mxu0 0.0
        %1056 = vmatpush1.msra.mxu0 0.0
        %1057 = vmatprep.subr.mxu0 0.0
        %1058 = vmatpush1.msra.mxu0 0.0
        %1059 = vmatprep.subr.mxu0 0.0
        %1060 = vmatpush1.msra.mxu0 0.0
        %1061 = vmatprep.subr.mxu0 0.0
        %1062 = vmatpush1.msra.mxu0 0.0
        %1063 = vmatprep.subr.mxu0 0.0
        %1064 = vmatpush1.msra.mxu0 0.0
        %1065 = vmatprep.subr.mxu0 0.0
        %1066 = vmatpush1.msra.mxu0 0.0
        %1067 = vmatprep.subr.mxu0 0.0
        %1068 = vmatpush1.msra.mxu0 0.0
        %1069 = vmatprep.subr.mxu0 0.0
        %1070 = vmatpush1.msra.mxu0 0.0
        %1071 = vmatprep.subr.mxu0 0.0
        %1072 = vmatpush1.msra.mxu0 0.0
        %1073 = vmatprep.subr.mxu0 0.0
        %1074 = vmatpush1.msra.mxu0 0.0
        %1075 = vmatprep.subr.mxu0 0.0
        %1076 = vmatpush1.msra.mxu0 0.0
        %1077 = vmatprep.subr.mxu0 0.0
        %1078 = vmatpush1.msra.mxu0 0.0
        %1079 = vmatprep.subr.mxu0 0.0
        %1080 = vmatpush1.msra.mxu0 0.0
        %1081 = vmatprep.subr.mxu0 0.0
        %1082 = vmatpush1.msra.mxu0 0.0
        %1083 = vmatprep.subr.mxu0 0.0
        %1084 = vmatpush1.msra.mxu0 0.0
        %1085 = vmatprep.subr.mxu0 0.0
        %1086 = vmatpush1.msra.mxu0 0.0
        %1087 = vmatprep.subr.mxu0 0.0
        %1088 = vmatpush1.msra.mxu0 0.0
        %1089 = vmatprep.subr.mxu0 0.0
        %1090 = vmatpush1.msra.mxu0 0.0
        %1091 = vmatprep.subr.mxu0 0.0
        %1092 = vmatpush1.msra.mxu0 0.0
        %1093 = vmatprep.mubr.f32.mxu0 0.0
        %1094 = vmatmul.mubr.f32.gmra.mrb[0].mxu0 %v596
        %v1095 = vpop.f32.mrb[0].mxu0
        %v1096 = vadd.f32 0.0, %v1095
        %v1097 = vpop.f32.mrb[0].mxu0
        %1098 = vmatprep.mubr.f32.mxu0 0.0
        %1099 = vmatmul.mubr.f32.gmra.mrb[0].mxu0 %v599
        %v1100 = vpop.f32.mrb[0].mxu0
        %v1101 = vadd.f32 0.0, %v1100
        %v1102 = vpop.f32.mrb[0].mxu0
        %1103 = vdwg.mxu0
        %v1104 = vmul.f32 %v1096, %v1026
        %v1105 = vmul.f32 %v1101, %v1028
        %s1106 = scalar_lea.vmem [#allocation2], 48
        %1107 = vst.msk [vmem:[%s1106] sm:$0xff] %vm410, %v1104
        %1108 = vst.msk [vmem:[%s1106 + $0x8] sm:$0xff] %vm410, %v1105
        %v1109 = vld [vmem:[#allocation2] sm:$0xff]
        %v1110 = vld [vmem:[#allocation2 + $0x8] sm:$0xff]
        %v1111 = vld [vmem:[#allocation2 + $0x10] sm:$0xff]
        %v1112 = vld [vmem:[#allocation2 + $0x18] sm:$0xff]
        %v1113 = vld [vmem:[#allocation2 + $0x20] sm:$0xff]
        %v1114 = vld [vmem:[#allocation2 + $0x28] sm:$0xff]
        %v1115 = vld [vmem:[#allocation2 + $0x30] sm:$0xff]
        %v1116 = vld [vmem:[#allocation2 + $0x38] sm:$0xff]
        %v1117 = vld [vmem:[%s236] sm:$0xff]
        %v1118 = vld [vmem:[%s236 + $0x8] sm:$0xff]
        %v1119 = vld [vmem:[%s236 + $0x10] sm:$0xff]
        %v1120 = vld [vmem:[%s236 + $0x18] sm:$0xff]
        %v1121 = vld [vmem:[%s236 + $0x20] sm:$0xff]
        %v1122 = vld [vmem:[%s236 + $0x28] sm:$0xff]
        %v1123 = vld [vmem:[%s236 + $0x30] sm:$0xff]
        %v1124 = vld [vmem:[%s236 + $0x38] sm:$0xff]
        %v1125 = vmul.f32 %v1109, %v1117
        %v1126 = vmul.f32 %v1110, %v1118
        %v1127 = vmul.f32 %v1111, %v1119
        %v1128 = vmul.f32 %v1112, %v1120
        %v1129 = vmul.f32 %v1113, %v1121
        %v1130 = vmul.f32 %v1114, %v1122
        %v1131 = vmul.f32 %v1115, %v1123
        %v1132 = vmul.f32 %v1116, %v1124
        %v1133 = vsel %vm410, %v1125, 0.0
        %1134 = vadd.xlane.f32.xlu0 %v1133
        %v1135 = vpop.xlane.xlu0 %1134
        %v1136 = vsel %vm410, %v1126, 0.0
        %1137 = vadd.xlane.f32.xlu0 %v1136
        %v1138 = vpop.xlane.xlu0 %1137
        %v1139 = vsel %vm410, %v1127, 0.0
        %1140 = vadd.xlane.f32.xlu0 %v1139
        %v1141 = vpop.xlane.xlu0 %1140
        %v1142 = vsel %vm410, %v1128, 0.0
        %1143 = vadd.xlane.f32.xlu0 %v1142
        %v1144 = vpop.xlane.xlu0 %1143
        %v1145 = vsel %vm410, %v1129, 0.0
        %1146 = vadd.xlane.f32.xlu0 %v1145
        %v1147 = vpop.xlane.xlu0 %1146
        %v1148 = vsel %vm410, %v1130, 0.0
        %1149 = vadd.xlane.f32.xlu0 %v1148
        %v1150 = vpop.xlane.xlu0 %1149
        %v1151 = vsel %vm410, %v1131, 0.0
        %1152 = vadd.xlane.f32.xlu0 %v1151
        %v1153 = vpop.xlane.xlu0 %1152
        %v1154 = vsel %vm410, %v1132, 0.0
        %1155 = vadd.xlane.f32.xlu0 %v1154
        %v1156 = vpop.xlane.xlu0 %1155
        %v1165 = vlaneseq
        %v1166 = vand.u32 %v1165, 127
        %v1167 = vlaneseq
        %v1168 = vshrl.u32 %v1167, 7
        %v1169 = vsub.s32 %v1166, %v1168
        %v1170 = vrot.slane %v1135, %v1169
        %v1171 = vadd.s32 %v1166, 4294967288
        %v1172 = vlaneseq
        %v1173 = vshrl.u32 %v1172, 7
        %v1174 = vsub.s32 %v1171, %v1173
        %v1175 = vrot.slane %v1138, %v1174
        %vm1176 = vcmask 130112
        %v1177 = vsel %vm1176, %v1175, %v1170
        %v1178 = vlaneseq
        %v1179 = vshrl.u32 %v1178, 7
        %v1180 = vsub.s32 %v1166, %v1179
        %v1181 = vrot.slane %v1141, %v1180
        %v1182 = vlaneseq
        %v1183 = vshrl.u32 %v1182, 7
        %v1184 = vsub.s32 %v1171, %v1183
        %v1185 = vrot.slane %v1144, %v1184
        %v1186 = vsel %vm1176, %v1185, %v1181
        %v1187 = vlaneseq
        %v1188 = vshrl.u32 %v1187, 7
        %v1189 = vsub.s32 %v1166, %v1188
        %v1190 = vrot.slane %v1147, %v1189
        %v1191 = vlaneseq
        %v1192 = vshrl.u32 %v1191, 7
        %v1193 = vsub.s32 %v1171, %v1192
        %v1194 = vrot.slane %v1150, %v1193
        %v1195 = vsel %vm1176, %v1194, %v1190
        %v1196 = vlaneseq
        %v1197 = vshrl.u32 %v1196, 7
        %v1198 = vsub.s32 %v1166, %v1197
        %v1199 = vrot.slane %v1153, %v1198
        %v1200 = vlaneseq
        %v1201 = vshrl.u32 %v1200, 7
        %v1202 = vsub.s32 %v1171, %v1201
        %v1203 = vrot.slane %v1156, %v1202
        %v1204 = vsel %vm1176, %v1203, %v1199
        %vm1205 = vcmask 1041409
        %v1206 = vsel %vm1205, %v1186, %v1177
        %vm1207 = vcmask 1042434
        %v1208 = vsel %vm1207, %v1195, %v1206
        %vm1209 = vcmask 1043459
        %v1210 = vsel %vm1209, %v1204, %v1208
        %vm1212 = vcmask 125952
        %v1213 = vsel %vm1212, %v1210, 0.0
        %1214 = vadd.xlane.f32.xlu0 %v1213
        %v1215 = vpop.xlane.xlu0 %1214
        %v1216 = vsel %vm410, %v1109, 0.0
        %1217 = vadd.xlane.f32.xlu0 %v1216
        %v1218 = vpop.xlane.xlu0 %1217
        %v1219 = vsel %vm410, %v1110, 0.0
        %1220 = vadd.xlane.f32.xlu0 %v1219
        %v1221 = vpop.xlane.xlu0 %1220
        %v1222 = vsel %vm410, %v1111, 0.0
        %1223 = vadd.xlane.f32.xlu0 %v1222
        %v1224 = vpop.xlane.xlu0 %1223
        %v1225 = vsel %vm410, %v1112, 0.0
        %1226 = vadd.xlane.f32.xlu0 %v1225
        %v1227 = vpop.xlane.xlu0 %1226
        %v1228 = vsel %vm410, %v1113, 0.0
        %1229 = vadd.xlane.f32.xlu0 %v1228
        %v1230 = vpop.xlane.xlu0 %1229
        %v1231 = vsel %vm410, %v1114, 0.0
        %1232 = vadd.xlane.f32.xlu0 %v1231
        %v1233 = vpop.xlane.xlu0 %1232
        %v1234 = vsel %vm410, %v1115, 0.0
        %1235 = vadd.xlane.f32.xlu0 %v1234
        %v1236 = vpop.xlane.xlu0 %1235
        %v1237 = vsel %vm410, %v1116, 0.0
        %1238 = vadd.xlane.f32.xlu0 %v1237
        %v1239 = vpop.xlane.xlu0 %1238
        %v1248 = vlaneseq
        %v1249 = vshrl.u32 %v1248, 7
        %v1250 = vsub.s32 %v1166, %v1249
        %v1251 = vrot.slane %v1218, %v1250
        %v1252 = vlaneseq
        %v1253 = vshrl.u32 %v1252, 7
        %v1254 = vsub.s32 %v1171, %v1253
        %v1255 = vrot.slane %v1221, %v1254
        %v1256 = vsel %vm1176, %v1255, %v1251
        %v1257 = vlaneseq
        %v1258 = vshrl.u32 %v1257, 7
        %v1259 = vsub.s32 %v1166, %v1258
        %v1260 = vrot.slane %v1224, %v1259
        %v1261 = vlaneseq
        %v1262 = vshrl.u32 %v1261, 7
        %v1263 = vsub.s32 %v1171, %v1262
        %v1264 = vrot.slane %v1227, %v1263
        %v1265 = vsel %vm1176, %v1264, %v1260
        %v1266 = vlaneseq
        %v1267 = vshrl.u32 %v1266, 7
        %v1268 = vsub.s32 %v1166, %v1267
        %v1269 = vrot.slane %v1230, %v1268
        %v1270 = vlaneseq
        %v1271 = vshrl.u32 %v1270, 7
        %v1272 = vsub.s32 %v1171, %v1271
        %v1273 = vrot.slane %v1233, %v1272
        %v1274 = vsel %vm1176, %v1273, %v1269
        %v1275 = vlaneseq
        %v1276 = vshrl.u32 %v1275, 7
        %v1277 = vsub.s32 %v1166, %v1276
        %v1278 = vrot.slane %v1236, %v1277
        %v1279 = vlaneseq
        %v1280 = vshrl.u32 %v1279, 7
        %v1281 = vsub.s32 %v1171, %v1280
        %v1282 = vrot.slane %v1239, %v1281
        %v1283 = vsel %vm1176, %v1282, %v1278
        %v1284 = vsel %vm1205, %v1265, %v1256
        %v1285 = vsel %vm1207, %v1274, %v1284
        %v1286 = vsel %vm1209, %v1283, %v1285
        %v1288 = vsel %vm1212, %v1286, 0.0
        %1289 = vadd.xlane.f32.xlu0 %v1288
        %v1290 = vpop.xlane.xlu0 %1289
        %vm1291 = vcmp.eq.s32.totalorder %v1166, 0
        %v1292 = vsel %vm1291, %v1215, 0.0
        %vm1293 = vcmp.eq.s32.totalorder %v1166, 1
        %v1294 = vsel %vm1293, %v1290, 0.0
        %v1295 = vadd.f32 %v1292, %v1294
        %1296 = vst [vmem:[%s282] sm:$0xf] %v1295
        %s1297 = sand.u32 %s127, 1
        %s1298 = scalar_lea.sflag [#allocation5], %s1297
        %s1299 = sand.u32 %s127, 1
        %s1300 = smul.addr %s1299, 4
        %s1301 = scalar_lea.vmem [#allocation11], %s1300
        // Predicated region
        $region53: #{tpu_custom_call.1} parent=35 // pred_check
          %p1302 = pneg %p137
        $region54: #{tpu_custom_call.1} parent=35 // pred_check_branch
          %1304 = sbr.rel (%p1302) target = $region56
        $region55: #{tpu_custom_call.1} parent=35 // pred_region
          %s1306 = ssub.s32 64, 64
          %1307 = vsyncadd %s1298, %s1306
          %s1308 = smul.addr %s25, 64
          %s1309 = scalar_lea.hbm %s4, %s1308
          %s1311 = sshll.u32 %s1301, 4
          %s1312 = int_to_ptr.vmem [resolvable:$true] %s1311
          %1314 = dma.vmem_to_hbm [thread:$0]  %s1312, 64, %s1309, %s1298
        $region56: #{tpu_custom_call.1} parent=35 // pred_fallthru
          _
      $region36: #{tpu_custom_call.1} parent=5 // pred_fallthru
        _
      %p1315 = scmp.le.s32.totalorder 2, %s20
      // Predicated region
      $region57: #{tpu_custom_call.1} parent=5 // pred_check
        %p1316 = pneg %p1315
      $region58: #{tpu_custom_call.1} parent=5 // pred_check_branch
        %1318 = sbr.rel (%p1316) target = $region60
      $region59: #{tpu_custom_call.1} parent=5 // pred_region
        %s1319 = ssub.s32 %s20, 2
        // Predicated region
        $region61: #{tpu_custom_call.1} parent=59 // pred_check
          %p1320 = pneg %p143
        $region62: #{tpu_custom_call.1} parent=59 // pred_check_branch
          %1322 = sbr.rel (%p1320) target = $region64
        $region63: #{tpu_custom_call.1} parent=59 // pred_region
          %s1323 = sand.u32 %s128, 1
          %s1324 = scalar_lea.sflag [#allocation5], %s1323
          %s1325 = sand.u32 %s128, 1
          %s1326 = smul.addr %s1325, 4
          %s1327 = scalar_lea.vmem [#allocation11], %s1326
          %1328 = dma.done %s1324, 64
        $region64: #{tpu_custom_call.1} parent=59 // pred_fallthru
          _
      $region60: #{tpu_custom_call.1} parent=5 // pred_fallthru
        _
    $region6: #{tpu_custom_call.1} parent=1 // loop_footer
      %s24 = sadd.s32 1, %s20
    $region7: #{tpu_custom_call.1} parent=1 // loop_footer_branch
      %19 = sbr.rel target = $region3
    $region8: #{tpu_custom_call.1} parent=1 // loop_exit
      _
    %1329 = vsyncpa [#allocation4], 1
    %s1330 = scalar_lea.sflag [#allocation4], 1
    %1331 = vsyncpa %s1330, 1
    %1332 = vsyncpa [#allocation7], 1
    %s1333 = scalar_lea.sflag [#allocation7], 1
    %1334 = vsyncpa %s1333, 1
    %1335 = vsyncpa [#allocation10], 1
    %1336 = vsyncpa [#allocation5], 1
    %s1337 = scalar_lea.sflag [#allocation5], 1
    %1338 = vsyncpa %s1337, 1

</llo_original>
